<compile_context>
chip_gen: v7x
topology: tpu7x:2x2x1
jax: 0.10.0
libtpu: 0.0.40
codegen_flags: <defaults>
</compile_context>

<pallas_src>
import functools

import jax
import jax.numpy as jnp
from jax.experimental import pallas as pl
from jax.experimental.pallas import tpu as pltpu

EPS = 1e-5
K = 3       # kernel size
PAD = 1     # padding (stride 1, required for the residual add, as in the PyTorch module)


def residual_block_kernel(x_ref, m_ref, w1_ref, b1_ref, g1_ref, be1_ref,
                          a_ref, w2_ref, b2_ref, g2_ref, be2_ref,
                          out_ref, *, width):
    # Layout: (C, N*H*W).  Lane axis = fused batch+spatial; sublane axis = channels.
    Cin, NHW = x_ref.shape
    inv_m = 1.0 / NHW                 # BN averages over (N, H, W) == the whole lane axis

    # ---- hoisted loads: each ref is read exactly once ----
    x = x_ref[...]                    # reused for conv1 input AND the residual add
    masks = m_ref[...]                # (9, NHW) 0/1 border-validity per tap
    w1, w2 = w1_ref[...], w2_ref[...]          # (Cout, 9*Cin)
    b1, b2 = b1_ref[...], b2_ref[...]          # (Cout, 1)
    g1, g2 = g1_ref[...], g2_ref[...]          # (Cout, 1)
    be1, be2 = be1_ref[...], be2_ref[...]      # (Cout, 1)
    alpha = a_ref[0]                            # PReLU scalar (SMEM)

    def conv3x3(inp, w, b):
        # Build the masked/rolled im2col stack P = (9*Cin, NHW), then one MXU matmul.
        # Per tap: one lane-roll (XLU) + one mask multiply (VPU); the 9*Cin contraction
        # runs on the MXU instead of broadcast-FMA chains on the VALU.
        cols = []
        for kh in range(K):
            for kw in range(K):
                t = kh * K + kw
                d = (kh - PAD) * width + (kw - PAD)     # flattened spatial shift
                if d == 0:
                    cols.append(inp)                    # center tap: mask is all ones
                else:
                    # xs[q] = inp[q + d]; lanes whose shifted position leaves their own
                    # image (incl. any wrap across image/array boundaries) are zeroed
                    # by the precomputed per-tap mask.
                    xs = pltpu.roll(inp, (-d) % NHW, axis=1)
                    cols.append(xs * masks[t:t + 1, :])
        p = jnp.concatenate(cols, axis=0)               # (9*Cin, NHW)
        y = jnp.dot(w, p,
                    preferred_element_type=jnp.float32,
                    precision=jax.lax.Precision.HIGHEST)
        return y + b                                    # bias (Cout, 1) broadcasts

    def batchnorm(y, g, be):
        # Training-mode BatchNorm2d: biased stats over (N, H, W) per channel.
        # Two-pass (shifted) variance; scale folded on the tiny (C, 1) tensors so the
        # full-size math is a single mul+add.
        mean = jnp.sum(y, axis=1, keepdims=True) * inv_m        # (C, 1)
        d = y - mean
        var = jnp.sum(d * d, axis=1, keepdims=True) * inv_m     # (C, 1)
        scale = jax.lax.rsqrt(var + EPS) * g                    # (C, 1), rsqrt on EUP
        return d * scale + be

    # ---- conv1 -> bn1 -> PReLU ----
    h = batchnorm(conv3x3(x, w1, b1), g1, be1)
    h = jnp.where(h > 0, h, alpha * h)

    # ---- conv2 -> bn2 -> residual add (x reused; single lane-dense store) ----
    y2 = batchnorm(conv3x3(h, w2, b2), g2, be2)
    out_ref[...] = y2 + x


@jax.jit
def residual_block(x_nchw, params):
    (w1, b1, g1, be1, a, w2, b2, g2, be2) = params
    N, C, H, W = x_nchw.shape
    Cout = w1.shape[0]
    assert Cout == C, "residual add requires in_ch == out_channel"
    HW = H * W
    NHW = N * HW

    # NCHW -> (C, N*H*W): channels on sublanes, fused batch+spatial on lanes.
    x2 = jnp.transpose(x_nchw, (1, 0, 2, 3)).reshape(C, NHW).astype(jnp.float32)

    # 0/1 border-validity masks per tap, tiled over the batch: (9, N*H*W).
    # (Static shapes -> constant-folded under jit.)
    hh = jnp.arange(H)[:, None]
    ww = jnp.arange(W)[None, :]
    rows = []
    for kh in range(K):
        for kw in range(K):
            dh, dw = kh - PAD, kw - PAD
            valid = ((hh + dh >= 0) & (hh + dh < H) &
                     (ww + dw >= 0) & (ww + dw < W))
            rows.append(valid.reshape(HW))
    masks = jnp.tile(jnp.stack(rows).astype(jnp.float32), (1, N))     # (9, NHW)

    # Conv weights OIHW -> (Cout, 9*Cin), column k = (kh*3+kw)*Cin + ci
    # (matches the row ordering of the in-kernel im2col stack).
    def repack(w_oihw):
        w = jnp.transpose(w_oihw, (0, 2, 3, 1))          # (Cout, kh, kw, Cin)
        return w.reshape(Cout, K * K * C).astype(jnp.float32)

    def chan(v):                                         # -> (C, 1) broadcast vector
        return v.reshape(C, 1).astype(jnp.float32)

    args = (
        x2, masks,
        repack(w1), chan(b1), chan(g1), chan(be1),
        a.reshape(1).astype(jnp.float32),                # PReLU scalar -> SMEM
        repack(w2), chan(b2), chan(g2), chan(be2),
    )

    vmem = pl.BlockSpec(memory_space=pltpu.MemorySpace.VMEM)
    smem = pl.BlockSpec(memory_space=pltpu.MemorySpace.SMEM)
    in_specs = [vmem, vmem, vmem, vmem, vmem, vmem, smem, vmem, vmem, vmem, vmem]

    out2 = pl.pallas_call(
        functools.partial(residual_block_kernel, width=W),
        out_shape=jax.ShapeDtypeStruct((C, NHW), jnp.float32),
        in_specs=in_specs,
        out_specs=vmem,
    )(*args)

    # (C, N*H*W) -> NCHW
    return jnp.transpose(out2.reshape(C, N, H, W), (1, 0, 2, 3))


def reference_forward(x, params):
    """Pure-JAX reference mirroring the PyTorch module (training-mode BN)."""
    (w1, b1, g1, be1, a, w2, b2, g2, be2) = params

    def conv(x, w, b):
        y = jax.lax.conv_general_dilated(
            x, w, window_strides=(1, 1), padding=((PAD, PAD), (PAD, PAD)),
            dimension_numbers=("NCHW", "OIHW", "NCHW"),
            precision=jax.lax.Precision.HIGHEST)
        return y + b[None, :, None, None]

    def bn(x, g, be):
        m = x.mean(axis=(0, 2, 3), keepdims=True)
        v = ((x - m) ** 2).mean(axis=(0, 2, 3), keepdims=True)
        return (x - m) / jnp.sqrt(v + EPS) * g[None, :, None, None] + be[None, :, None, None]

    h = bn(conv(x, w1, b1), g1, be1)
    h = jnp.where(h > 0, h, a[0] * h)
    h = bn(conv(h, w2, b2), g2, be2)
    return h + x


if __name__ == "__main__":
    key = jax.random.PRNGKey(0)
    N, C, H, W = 2, 4, 16, 16          # in_ch = out_channel = 4, kernel=3, stride=1, pd=1
    k_x, k_w1, k_b1, k_w2, k_b2 = jax.random.split(key, 5)

    x = jax.random.normal(k_x, (N, C, H, W), jnp.float32)

    # Deterministic parameter init (shapes from the PyTorch module __init__)
    w1 = 0.1 * jax.random.normal(k_w1, (C, C, K, K), jnp.float32)   # conv1 weight (OIHW)
    b1 = 0.1 * jax.random.normal(k_b1, (C,), jnp.float32)           # conv1 bias
    g1 = jnp.ones((C,), jnp.float32)                                 # bn1 gamma
    be1 = jnp.zeros((C,), jnp.float32)                               # bn1 beta
    a = jnp.array([0.25], jnp.float32)                               # PReLU (default init)
    w2 = 0.1 * jax.random.normal(k_w2, (C, C, K, K), jnp.float32)   # conv2 weight
    b2 = 0.1 * jax.random.normal(k_b2, (C,), jnp.float32)           # conv2 bias
    g2 = jnp.ones((C,), jnp.float32)                                 # bn2 gamma
    be2 = jnp.zeros((C,), jnp.float32)                               # bn2 beta

    params = (w1, b1, g1, be1, a, w2, b2, g2, be2)

    out = jax.block_until_ready(residual_block(x, params))
    ref = jax.block_until_ready(reference_forward(x, params))

    assert out.shape == (N, C, H, W)
    # Tolerance covers the MXU multi-pass f32 matmul vs XLA conv precision class.
    assert jnp.allclose(out, ref, atol=2e-3, rtol=2e-3), \
        f"max abs diff {jnp.max(jnp.abs(out - ref))}"
    print("KERNEL_OK")
</pallas_src>

<mosaic_0001>
module attributes {stable_mosaic.version = 11 : i64} {
  func.func @residual_block_kernel(%arg0: memref<4x512xf32, #tpu.memory_space<vmem>>, %arg1: memref<9x512xf32, #tpu.memory_space<vmem>>, %arg2: memref<4x36xf32, #tpu.memory_space<vmem>>, %arg3: memref<4x1xf32, #tpu.memory_space<vmem>>, %arg4: memref<4x1xf32, #tpu.memory_space<vmem>>, %arg5: memref<4x1xf32, #tpu.memory_space<vmem>>, %arg6: memref<1xf32, #tpu.memory_space<smem>>, %arg7: memref<4x36xf32, #tpu.memory_space<vmem>>, %arg8: memref<4x1xf32, #tpu.memory_space<vmem>>, %arg9: memref<4x1xf32, #tpu.memory_space<vmem>>, %arg10: memref<4x1xf32, #tpu.memory_space<vmem>>, %arg11: memref<4x512xf32, #tpu.memory_space<vmem>>) attributes {dimension_semantics = [], scalar_prefetch = 0 : i64, scratch_operands = 0 : i64, tpu.core_type = #tpu.core_type<tc>} {
    %c0 = arith.constant 0 : index
    %c0_0 = arith.constant 0 : index
    %0 = vector.load %arg0[%c0, %c0_0] : memref<4x512xf32, #tpu.memory_space<vmem>>, vector<4x512xf32>
    %c0_1 = arith.constant 0 : index
    %c0_2 = arith.constant 0 : index
    %1 = vector.load %arg1[%c0_1, %c0_2] : memref<9x512xf32, #tpu.memory_space<vmem>>, vector<9x512xf32>
    %c0_3 = arith.constant 0 : index
    %c0_4 = arith.constant 0 : index
    %2 = vector.load %arg2[%c0_3, %c0_4] : memref<4x36xf32, #tpu.memory_space<vmem>>, vector<4x36xf32>
    %c0_5 = arith.constant 0 : index
    %c0_6 = arith.constant 0 : index
    %3 = vector.load %arg7[%c0_5, %c0_6] : memref<4x36xf32, #tpu.memory_space<vmem>>, vector<4x36xf32>
    %c0_7 = arith.constant 0 : index
    %c0_8 = arith.constant 0 : index
    %4 = vector.load %arg3[%c0_7, %c0_8] : memref<4x1xf32, #tpu.memory_space<vmem>>, vector<4x1xf32>
    %c0_9 = arith.constant 0 : index
    %c0_10 = arith.constant 0 : index
    %5 = vector.load %arg8[%c0_9, %c0_10] : memref<4x1xf32, #tpu.memory_space<vmem>>, vector<4x1xf32>
    %c0_11 = arith.constant 0 : index
    %c0_12 = arith.constant 0 : index
    %6 = vector.load %arg4[%c0_11, %c0_12] : memref<4x1xf32, #tpu.memory_space<vmem>>, vector<4x1xf32>
    %c0_13 = arith.constant 0 : index
    %c0_14 = arith.constant 0 : index
    %7 = vector.load %arg9[%c0_13, %c0_14] : memref<4x1xf32, #tpu.memory_space<vmem>>, vector<4x1xf32>
    %c0_15 = arith.constant 0 : index
    %c0_16 = arith.constant 0 : index
    %8 = vector.load %arg5[%c0_15, %c0_16] : memref<4x1xf32, #tpu.memory_space<vmem>>, vector<4x1xf32>
    %c0_17 = arith.constant 0 : index
    %c0_18 = arith.constant 0 : index
    %9 = vector.load %arg10[%c0_17, %c0_18] : memref<4x1xf32, #tpu.memory_space<vmem>>, vector<4x1xf32>
    %c0_19 = arith.constant 0 : index
    %10 = memref.load %arg6[%c0_19] : memref<1xf32, #tpu.memory_space<smem>>
    %c17_i32 = arith.constant 17 : i32
    %11 = tpu.dynamic_rotate %0 by %c17_i32 dim 1 : vector<4x512xf32>, i32 -> vector<4x512xf32>
    %12 = vector.extract_strided_slice %1 {offsets = [0, 0], sizes = [1, 512], strides = [1, 1]} : vector<9x512xf32> to vector<1x512xf32>
    %13 = vector.broadcast %12 : vector<1x512xf32> to vector<4x512xf32>
    %14 = arith.mulf %11, %13 : vector<4x512xf32>
    %c16_i32 = arith.constant 16 : i32
    %15 = tpu.dynamic_rotate %0 by %c16_i32 dim 1 : vector<4x512xf32>, i32 -> vector<4x512xf32>
    %16 = vector.extract_strided_slice %1 {offsets = [1, 0], sizes = [1, 512], strides = [1, 1]} : vector<9x512xf32> to vector<1x512xf32>
    %17 = vector.broadcast %16 : vector<1x512xf32> to vector<4x512xf32>
    %18 = arith.mulf %15, %17 : vector<4x512xf32>
    %c15_i32 = arith.constant 15 : i32
    %19 = tpu.dynamic_rotate %0 by %c15_i32 dim 1 : vector<4x512xf32>, i32 -> vector<4x512xf32>
    %20 = vector.extract_strided_slice %1 {offsets = [2, 0], sizes = [1, 512], strides = [1, 1]} : vector<9x512xf32> to vector<1x512xf32>
    %21 = vector.broadcast %20 : vector<1x512xf32> to vector<4x512xf32>
    %22 = arith.mulf %19, %21 : vector<4x512xf32>
    %c1_i32 = arith.constant 1 : i32
    %23 = tpu.dynamic_rotate %0 by %c1_i32 dim 1 : vector<4x512xf32>, i32 -> vector<4x512xf32>
    %24 = vector.extract_strided_slice %1 {offsets = [3, 0], sizes = [1, 512], strides = [1, 1]} : vector<9x512xf32> to vector<1x512xf32>
    %25 = vector.broadcast %24 : vector<1x512xf32> to vector<4x512xf32>
    %26 = arith.mulf %23, %25 : vector<4x512xf32>
    %c511_i32 = arith.constant 511 : i32
    %27 = tpu.dynamic_rotate %0 by %c511_i32 dim 1 : vector<4x512xf32>, i32 -> vector<4x512xf32>
    %28 = vector.extract_strided_slice %1 {offsets = [5, 0], sizes = [1, 512], strides = [1, 1]} : vector<9x512xf32> to vector<1x512xf32>
    %29 = vector.broadcast %28 : vector<1x512xf32> to vector<4x512xf32>
    %30 = arith.mulf %27, %29 : vector<4x512xf32>
    %c497_i32 = arith.constant 497 : i32
    %31 = tpu.dynamic_rotate %0 by %c497_i32 dim 1 : vector<4x512xf32>, i32 -> vector<4x512xf32>
    %32 = vector.extract_strided_slice %1 {offsets = [6, 0], sizes = [1, 512], strides = [1, 1]} : vector<9x512xf32> to vector<1x512xf32>
    %33 = vector.broadcast %32 : vector<1x512xf32> to vector<4x512xf32>
    %34 = arith.mulf %31, %33 : vector<4x512xf32>
    %c496_i32 = arith.constant 496 : i32
    %35 = tpu.dynamic_rotate %0 by %c496_i32 dim 1 : vector<4x512xf32>, i32 -> vector<4x512xf32>
    %36 = vector.extract_strided_slice %1 {offsets = [7, 0], sizes = [1, 512], strides = [1, 1]} : vector<9x512xf32> to vector<1x512xf32>
    %37 = vector.broadcast %36 : vector<1x512xf32> to vector<4x512xf32>
    %38 = arith.mulf %35, %37 : vector<4x512xf32>
    %c495_i32 = arith.constant 495 : i32
    %39 = tpu.dynamic_rotate %0 by %c495_i32 dim 1 : vector<4x512xf32>, i32 -> vector<4x512xf32>
    %40 = vector.extract_strided_slice %1 {offsets = [8, 0], sizes = [1, 512], strides = [1, 1]} : vector<9x512xf32> to vector<1x512xf32>
    %41 = vector.broadcast %40 : vector<1x512xf32> to vector<4x512xf32>
    %42 = arith.mulf %39, %41 : vector<4x512xf32>
    %43 = tpu.concatenate %14, %18, %22, %26, %0, %30, %34, %38, %42 in 0 : vector<4x512xf32>, vector<4x512xf32>, vector<4x512xf32>, vector<4x512xf32>, vector<4x512xf32>, vector<4x512xf32>, vector<4x512xf32>, vector<4x512xf32>, vector<4x512xf32> -> vector<36x512xf32>
    %cst = arith.constant dense<0.000000e+00> : vector<4x512xf32>
    %44 = tpu.matmul %2, %43, %cst {dimension_numbers = #tpu.dot_dimension_numbers<[1], [0], [0], [1], [0, 0, 1, 1], [], []>, precision = #tpu.contract_precision<fp32>} : vector<4x36xf32>, vector<36x512xf32>, vector<4x512xf32> -> vector<4x512xf32>
    %45 = vector.broadcast %4 : vector<4x1xf32> to vector<4x512xf32>
    %46 = arith.addf %44, %45 : vector<4x512xf32>
    %cst_20 = arith.constant dense<0.000000e+00> : vector<4xf32>
    %47 = vector.multi_reduction <add>, %46, %cst_20 [1] : vector<4x512xf32> to vector<4xf32>
    %48 = vector.shape_cast %47 : vector<4xf32> to vector<4x1xf32>
    %cst_21 = arith.constant 0.001953125 : f32
    %49 = vector.broadcast %cst_21 : f32 to vector<4x1xf32>
    %50 = arith.mulf %48, %49 : vector<4x1xf32>
    %51 = vector.broadcast %50 : vector<4x1xf32> to vector<4x512xf32>
    %52 = arith.subf %46, %51 : vector<4x512xf32>
    %53 = arith.mulf %52, %52 : vector<4x512xf32>
    %cst_22 = arith.constant dense<0.000000e+00> : vector<4xf32>
    %54 = vector.multi_reduction <add>, %53, %cst_22 [1] : vector<4x512xf32> to vector<4xf32>
    %55 = vector.shape_cast %54 : vector<4xf32> to vector<4x1xf32>
    %cst_23 = arith.constant 0.001953125 : f32
    %56 = vector.broadcast %cst_23 : f32 to vector<4x1xf32>
    %57 = arith.mulf %55, %56 : vector<4x1xf32>
    %cst_24 = arith.constant 9.99999974E-6 : f32
    %58 = vector.broadcast %cst_24 : f32 to vector<4x1xf32>
    %59 = arith.addf %57, %58 : vector<4x1xf32>
    %60 = math.rsqrt %59 : vector<4x1xf32>
    %61 = arith.mulf %60, %6 : vector<4x1xf32>
    %62 = vector.broadcast %61 : vector<4x1xf32> to vector<4x512xf32>
    %63 = arith.mulf %52, %62 : vector<4x512xf32>
    %64 = vector.broadcast %8 : vector<4x1xf32> to vector<4x512xf32>
    %65 = arith.addf %63, %64 : vector<4x512xf32>
    %cst_25 = arith.constant 0.000000e+00 : f32
    %66 = vector.broadcast %cst_25 : f32 to vector<4x512xf32>
    %67 = arith.cmpf ogt, %65, %66 : vector<4x512xf32>
    %68 = vector.broadcast %10 : f32 to vector<4x512xf32>
    %69 = arith.mulf %68, %65 : vector<4x512xf32>
    %70 = arith.select %67, %65, %69 : vector<4x512xi1>, vector<4x512xf32>
    %c17_i32_26 = arith.constant 17 : i32
    %71 = tpu.dynamic_rotate %70 by %c17_i32_26 dim 1 : vector<4x512xf32>, i32 -> vector<4x512xf32>
    %72 = vector.extract_strided_slice %1 {offsets = [0, 0], sizes = [1, 512], strides = [1, 1]} : vector<9x512xf32> to vector<1x512xf32>
    %73 = vector.broadcast %72 : vector<1x512xf32> to vector<4x512xf32>
    %74 = arith.mulf %71, %73 : vector<4x512xf32>
    %c16_i32_27 = arith.constant 16 : i32
    %75 = tpu.dynamic_rotate %70 by %c16_i32_27 dim 1 : vector<4x512xf32>, i32 -> vector<4x512xf32>
    %76 = vector.extract_strided_slice %1 {offsets = [1, 0], sizes = [1, 512], strides = [1, 1]} : vector<9x512xf32> to vector<1x512xf32>
    %77 = vector.broadcast %76 : vector<1x512xf32> to vector<4x512xf32>
    %78 = arith.mulf %75, %77 : vector<4x512xf32>
    %c15_i32_28 = arith.constant 15 : i32
    %79 = tpu.dynamic_rotate %70 by %c15_i32_28 dim 1 : vector<4x512xf32>, i32 -> vector<4x512xf32>
    %80 = vector.extract_strided_slice %1 {offsets = [2, 0], sizes = [1, 512], strides = [1, 1]} : vector<9x512xf32> to vector<1x512xf32>
    %81 = vector.broadcast %80 : vector<1x512xf32> to vector<4x512xf32>
    %82 = arith.mulf %79, %81 : vector<4x512xf32>
    %c1_i32_29 = arith.constant 1 : i32
    %83 = tpu.dynamic_rotate %70 by %c1_i32_29 dim 1 : vector<4x512xf32>, i32 -> vector<4x512xf32>
    %84 = vector.extract_strided_slice %1 {offsets = [3, 0], sizes = [1, 512], strides = [1, 1]} : vector<9x512xf32> to vector<1x512xf32>
    %85 = vector.broadcast %84 : vector<1x512xf32> to vector<4x512xf32>
    %86 = arith.mulf %83, %85 : vector<4x512xf32>
    %c511_i32_30 = arith.constant 511 : i32
    %87 = tpu.dynamic_rotate %70 by %c511_i32_30 dim 1 : vector<4x512xf32>, i32 -> vector<4x512xf32>
    %88 = vector.extract_strided_slice %1 {offsets = [5, 0], sizes = [1, 512], strides = [1, 1]} : vector<9x512xf32> to vector<1x512xf32>
    %89 = vector.broadcast %88 : vector<1x512xf32> to vector<4x512xf32>
    %90 = arith.mulf %87, %89 : vector<4x512xf32>
    %c497_i32_31 = arith.constant 497 : i32
    %91 = tpu.dynamic_rotate %70 by %c497_i32_31 dim 1 : vector<4x512xf32>, i32 -> vector<4x512xf32>
    %92 = vector.extract_strided_slice %1 {offsets = [6, 0], sizes = [1, 512], strides = [1, 1]} : vector<9x512xf32> to vector<1x512xf32>
    %93 = vector.broadcast %92 : vector<1x512xf32> to vector<4x512xf32>
    %94 = arith.mulf %91, %93 : vector<4x512xf32>
    %c496_i32_32 = arith.constant 496 : i32
    %95 = tpu.dynamic_rotate %70 by %c496_i32_32 dim 1 : vector<4x512xf32>, i32 -> vector<4x512xf32>
    %96 = vector.extract_strided_slice %1 {offsets = [7, 0], sizes = [1, 512], strides = [1, 1]} : vector<9x512xf32> to vector<1x512xf32>
    %97 = vector.broadcast %96 : vector<1x512xf32> to vector<4x512xf32>
    %98 = arith.mulf %95, %97 : vector<4x512xf32>
    %c495_i32_33 = arith.constant 495 : i32
    %99 = tpu.dynamic_rotate %70 by %c495_i32_33 dim 1 : vector<4x512xf32>, i32 -> vector<4x512xf32>
    %100 = vector.extract_strided_slice %1 {offsets = [8, 0], sizes = [1, 512], strides = [1, 1]} : vector<9x512xf32> to vector<1x512xf32>
    %101 = vector.broadcast %100 : vector<1x512xf32> to vector<4x512xf32>
    %102 = arith.mulf %99, %101 : vector<4x512xf32>
    %103 = tpu.concatenate %74, %78, %82, %86, %70, %90, %94, %98, %102 in 0 : vector<4x512xf32>, vector<4x512xf32>, vector<4x512xf32>, vector<4x512xf32>, vector<4x512xf32>, vector<4x512xf32>, vector<4x512xf32>, vector<4x512xf32>, vector<4x512xf32> -> vector<36x512xf32>
    %cst_34 = arith.constant dense<0.000000e+00> : vector<4x512xf32>
    %104 = tpu.matmul %3, %103, %cst_34 {dimension_numbers = #tpu.dot_dimension_numbers<[1], [0], [0], [1], [0, 0, 1, 1], [], []>, precision = #tpu.contract_precision<fp32>} : vector<4x36xf32>, vector<36x512xf32>, vector<4x512xf32> -> vector<4x512xf32>
    %105 = vector.broadcast %5 : vector<4x1xf32> to vector<4x512xf32>
    %106 = arith.addf %104, %105 : vector<4x512xf32>
    %cst_35 = arith.constant dense<0.000000e+00> : vector<4xf32>
    %107 = vector.multi_reduction <add>, %106, %cst_35 [1] : vector<4x512xf32> to vector<4xf32>
    %108 = vector.shape_cast %107 : vector<4xf32> to vector<4x1xf32>
    %cst_36 = arith.constant 0.001953125 : f32
    %109 = vector.broadcast %cst_36 : f32 to vector<4x1xf32>
    %110 = arith.mulf %108, %109 : vector<4x1xf32>
    %111 = vector.broadcast %110 : vector<4x1xf32> to vector<4x512xf32>
    %112 = arith.subf %106, %111 : vector<4x512xf32>
    %113 = arith.mulf %112, %112 : vector<4x512xf32>
    %cst_37 = arith.constant dense<0.000000e+00> : vector<4xf32>
    %114 = vector.multi_reduction <add>, %113, %cst_37 [1] : vector<4x512xf32> to vector<4xf32>
    %115 = vector.shape_cast %114 : vector<4xf32> to vector<4x1xf32>
    %cst_38 = arith.constant 0.001953125 : f32
    %116 = vector.broadcast %cst_38 : f32 to vector<4x1xf32>
    %117 = arith.mulf %115, %116 : vector<4x1xf32>
    %cst_39 = arith.constant 9.99999974E-6 : f32
    %118 = vector.broadcast %cst_39 : f32 to vector<4x1xf32>
    %119 = arith.addf %117, %118 : vector<4x1xf32>
    %120 = math.rsqrt %119 : vector<4x1xf32>
    %121 = arith.mulf %120, %7 : vector<4x1xf32>
    %122 = vector.broadcast %121 : vector<4x1xf32> to vector<4x512xf32>
    %123 = arith.mulf %112, %122 : vector<4x512xf32>
    %124 = vector.broadcast %9 : vector<4x1xf32> to vector<4x512xf32>
    %125 = arith.addf %123, %124 : vector<4x512xf32>
    %126 = arith.addf %125, %0 : vector<4x512xf32>
    %c0_40 = arith.constant 0 : index
    %c0_41 = arith.constant 0 : index
    %127 = vector.load %arg11[%c0_40, %c0_41] : memref<4x512xf32, #tpu.memory_space<vmem>>, vector<4x512xf32>
    tpu.vector_store %arg11[%c0_40, %c0_41], %126 {strides = array<i32>} : memref<4x512xf32, #tpu.memory_space<vmem>>, vector<4x512xf32>,
    return
  }
}

</mosaic_0001>

<llo_original>
// kernel: residual_block.1
$region0: #{residual_block.1}
  #allocation0 [shape = 'u32[]', space=smem, size = 0x4, offset = 0x4, fixed_abs, tag = 'smem constant byte address 0x4 - core index']
  #allocation1 [shape = 'u32[144,128]{1,0:T(1,128)}', space=vmem, size = 0x12000, scoped, tag = 'internal scratch']
  #allocation2 [shape = 'f32[1]{0:T(128)S(6)}', space=smem, size = 0x200, scoped, tag = 'scoped memory for residual_block.1']
  %s0 = inlined_call_operand.vmem [shape: f32[4,512], index: 0, kind: input, shape index: {}]
  %s1 = inlined_call_operand.vmem [shape: f32[9,512], index: 1, kind: input, shape index: {}]
  %s2 = inlined_call_operand.vmem [shape: f32[4,36], index: 2, kind: input, shape index: {}]
  %s3 = inlined_call_operand.vmem [shape: f32[4,1], index: 3, kind: input, shape index: {}]
  %s4 = inlined_call_operand.vmem [shape: f32[4,1], index: 4, kind: input, shape index: {}]
  %s5 = inlined_call_operand.vmem [shape: f32[4,1], index: 5, kind: input, shape index: {}]
  %s6 = inlined_call_operand.<no memory space> [shape: f32[1], index: 6, kind: input, shape index: {}]
  %s7 = inlined_call_operand.vmem [shape: f32[4,36], index: 7, kind: input, shape index: {}]
  %s8 = inlined_call_operand.vmem [shape: f32[4,1], index: 8, kind: input, shape index: {}]
  %s9 = inlined_call_operand.vmem [shape: f32[4,1], index: 9, kind: input, shape index: {}]
  %s10 = inlined_call_operand.vmem [shape: f32[4,1], index: 10, kind: input, shape index: {}]
  %s11 = inlined_call_operand.vmem [shape: f32[4,512], index: 11, kind: output, shape index: {}]
  %s12 = sld [smem:[#allocation0]]
  $region54: #{residual_block.1} parent=0
    _
  %s14 = ssub.s32 1, %s12
  %s15 = scalar_select 0, %s14, %s12
  %16 = sst [smem:[#allocation2]] %s6
  // Predicated region
  $region2: #{residual_block.1} parent=0 // pred_check
    _
  $region3: #{residual_block.1} parent=0 // pred_check_branch
    %18 = sbr.rel (0) target = $region5
  $region4: #{residual_block.1} parent=0 // pred_region
    _
  $region5: #{residual_block.1} parent=0 // pred_fallthru
    _
  // Predicated region
  $region6: #{residual_block.1} parent=0 // pred_check
    _
  $region7: #{residual_block.1} parent=0 // pred_check_branch
    %20 = sbr.rel (0) target = $region9
  $region8: #{residual_block.1} parent=0 // pred_region
    _
  $region9: #{residual_block.1} parent=0 // pred_fallthru
    _
  // Predicated region
  $region10: #{residual_block.1} parent=0 // pred_check
    _
  $region11: #{residual_block.1} parent=0 // pred_check_branch
    %22 = sbr.rel (0) target = $region13
  $region12: #{residual_block.1} parent=0 // pred_region
    _
  $region13: #{residual_block.1} parent=0 // pred_fallthru
    _
  // Predicated region
  $region14: #{residual_block.1} parent=0 // pred_check
    _
  $region15: #{residual_block.1} parent=0 // pred_check_branch
    %24 = sbr.rel (0) target = $region17
  $region16: #{residual_block.1} parent=0 // pred_region
    _
  $region17: #{residual_block.1} parent=0 // pred_fallthru
    _
  // Predicated region
  $region18: #{residual_block.1} parent=0 // pred_check
    _
  $region19: #{residual_block.1} parent=0 // pred_check_branch
    %26 = sbr.rel (0) target = $region21
  $region20: #{residual_block.1} parent=0 // pred_region
    _
  $region21: #{residual_block.1} parent=0 // pred_fallthru
    _
  // Predicated region
  $region22: #{residual_block.1} parent=0 // pred_check
    _
  $region23: #{residual_block.1} parent=0 // pred_check_branch
    %28 = sbr.rel (0) target = $region25
  $region24: #{residual_block.1} parent=0 // pred_region
    _
  $region25: #{residual_block.1} parent=0 // pred_fallthru
    _
  // Predicated region
  $region26: #{residual_block.1} parent=0 // pred_check
    _
  $region27: #{residual_block.1} parent=0 // pred_check_branch
    %30 = sbr.rel (0) target = $region29
  $region28: #{residual_block.1} parent=0 // pred_region
    _
  $region29: #{residual_block.1} parent=0 // pred_fallthru
    _
  // Predicated region
  $region30: #{residual_block.1} parent=0 // pred_check
    _
  $region31: #{residual_block.1} parent=0 // pred_check_branch
    %32 = sbr.rel (0) target = $region33
  $region32: #{residual_block.1} parent=0 // pred_region
    _
  $region33: #{residual_block.1} parent=0 // pred_fallthru
    _
  // Predicated region
  $region34: #{residual_block.1} parent=0 // pred_check
    _
  $region35: #{residual_block.1} parent=0 // pred_check_branch
    %34 = sbr.rel (0) target = $region37
  $region36: #{residual_block.1} parent=0 // pred_region
    _
  $region37: #{residual_block.1} parent=0 // pred_fallthru
    _
  // Predicated region
  $region38: #{residual_block.1} parent=0 // pred_check
    _
  $region39: #{residual_block.1} parent=0 // pred_check_branch
    %36 = sbr.rel (0) target = $region41
  $region40: #{residual_block.1} parent=0 // pred_region
    _
  $region41: #{residual_block.1} parent=0 // pred_fallthru
    _
  // Predicated region
  $region42: #{residual_block.1} parent=0 // pred_check
    _
  $region43: #{residual_block.1} parent=0 // pred_check_branch
    %38 = sbr.rel (0) target = $region45
  $region44: #{residual_block.1} parent=0 // pred_region
    _
  $region45: #{residual_block.1} parent=0 // pred_fallthru
    _
  %v39 = vld [vmem:[%s0] sm:$0xff]
  %v40 = vld [vmem:[%s0 + $0x8] sm:$0xff]
  %v41 = vld [vmem:[%s1] sm:$0xff]
  %v42 = vld [vmem:[%s1 + $0x8] sm:$0xff]
  %v43 = vld [vmem:[%s1 + $0x10] sm:$0xff]
  %v44 = vld [vmem:[%s1 + $0x18] sm:$0xff]
  %v45 = vld [vmem:[%s1 + $0x20] sm:$0x1]
  %v46 = vld [vmem:[%s1 + $0x28] sm:$0x1]
  %v47 = vld [vmem:[%s1 + $0x30] sm:$0x1]
  %v48 = vld [vmem:[%s1 + $0x38] sm:$0x1]
  %v49 = vld [vmem:[%s2] sm:$0xf]
  %v50 = vld [vmem:[%s7] sm:$0xf]
  %v51 = vld [vmem:[%s3] sm:$0xf]
  %v52 = vld [vmem:[%s8] sm:$0xf]
  %v53 = vld [vmem:[%s4] sm:$0xf]
  %v54 = vld [vmem:[%s9] sm:$0xf]
  %v55 = vld [vmem:[%s5] sm:$0xf]
  %v56 = vld [vmem:[%s10] sm:$0xf]
  %s57 = sld [smem:[#allocation2]]
  %v60 = vcombine.high %v39, %v39
  %v61 = vcombine.high %v40, %v40
  %64 = vrot.lane.b32.xlu0 %v39, 17
  %v65 = vpop.permute.xlu0 %64
  %66 = vrot.lane.b32.xlu0 %v60, 17
  %v67 = vpop.permute.xlu0 %66
  %68 = vrot.lane.b32.xlu0 %v40, 17
  %v69 = vpop.permute.xlu0 %68
  %70 = vrot.lane.b32.xlu0 %v61, 17
  %v71 = vpop.permute.xlu0 %70
  %v72 = vlaneseq
  %v73 = vand.u32 %v72, 127
  %vm74 = vcmp.lt.s32.totalorder %v73, 17
  %v75 = vsel %vm74, %v69, %v71
  %v76 = vsel %vm74, %v67, %v69
  %v77 = vsel %vm74, %v65, %v67
  %v78 = vsel %vm74, %v71, %v65
  %v79 = vlaneseq
  %v80 = vshrl.u32 %v79, 7
  %v81 = vsub.s32 0, %v80
  %v82 = vrot.slane %v41, %v81
  %v83 = vlaneseq
  %v84 = vshrl.u32 %v83, 7
  %v85 = vsub.s32 0, %v84
  %v86 = vrot.slane %v42, %v85
  %v87 = vlaneseq
  %v88 = vshrl.u32 %v87, 7
  %v89 = vsub.s32 0, %v88
  %v90 = vrot.slane %v43, %v89
  %v91 = vlaneseq
  %v92 = vshrl.u32 %v91, 7
  %v93 = vsub.s32 0, %v92
  %v94 = vrot.slane %v44, %v93
  %v95 = vmul.f32 %v78, %v82
  %v96 = vmul.f32 %v77, %v86
  %v97 = vmul.f32 %v76, %v90
  %v98 = vmul.f32 %v75, %v94
  %99 = vrot.lane.b32.xlu0 %v39, 16
  %v100 = vpop.permute.xlu0 %99
  %101 = vrot.lane.b32.xlu0 %v60, 16
  %v102 = vpop.permute.xlu0 %101
  %103 = vrot.lane.b32.xlu0 %v40, 16
  %v104 = vpop.permute.xlu0 %103
  %105 = vrot.lane.b32.xlu0 %v61, 16
  %v106 = vpop.permute.xlu0 %105
  %vm107 = vcmp.lt.s32.totalorder %v73, 16
  %v108 = vsel %vm107, %v104, %v106
  %v109 = vsel %vm107, %v102, %v104
  %v110 = vsel %vm107, %v100, %v102
  %v111 = vsel %vm107, %v106, %v100
  %v112 = vlaneseq
  %v113 = vshrl.u32 %v112, 7
  %v114 = vsub.s32 1, %v113
  %v115 = vrot.slane %v41, %v114
  %v116 = vlaneseq
  %v117 = vshrl.u32 %v116, 7
  %v118 = vsub.s32 1, %v117
  %v119 = vrot.slane %v42, %v118
  %v120 = vlaneseq
  %v121 = vshrl.u32 %v120, 7
  %v122 = vsub.s32 1, %v121
  %v123 = vrot.slane %v43, %v122
  %v124 = vlaneseq
  %v125 = vshrl.u32 %v124, 7
  %v126 = vsub.s32 1, %v125
  %v127 = vrot.slane %v44, %v126
  %v128 = vmul.f32 %v111, %v115
  %v129 = vmul.f32 %v110, %v119
  %v130 = vmul.f32 %v109, %v123
  %v131 = vmul.f32 %v108, %v127
  %132 = vrot.lane.b32.xlu0 %v39, 15
  %v133 = vpop.permute.xlu0 %132
  %134 = vrot.lane.b32.xlu0 %v60, 15
  %v135 = vpop.permute.xlu0 %134
  %136 = vrot.lane.b32.xlu0 %v40, 15
  %v137 = vpop.permute.xlu0 %136
  %138 = vrot.lane.b32.xlu0 %v61, 15
  %v139 = vpop.permute.xlu0 %138
  %vm140 = vcmp.lt.s32.totalorder %v73, 15
  %v141 = vsel %vm140, %v137, %v139
  %v142 = vsel %vm140, %v135, %v137
  %v143 = vsel %vm140, %v133, %v135
  %v144 = vsel %vm140, %v139, %v133
  %v145 = vlaneseq
  %v146 = vshrl.u32 %v145, 7
  %v147 = vsub.s32 2, %v146
  %v148 = vrot.slane %v41, %v147
  %v149 = vlaneseq
  %v150 = vshrl.u32 %v149, 7
  %v151 = vsub.s32 2, %v150
  %v152 = vrot.slane %v42, %v151
  %v153 = vlaneseq
  %v154 = vshrl.u32 %v153, 7
  %v155 = vsub.s32 2, %v154
  %v156 = vrot.slane %v43, %v155
  %v157 = vlaneseq
  %v158 = vshrl.u32 %v157, 7
  %v159 = vsub.s32 2, %v158
  %v160 = vrot.slane %v44, %v159
  %v161 = vmul.f32 %v144, %v148
  %v162 = vmul.f32 %v143, %v152
  %v163 = vmul.f32 %v142, %v156
  %v164 = vmul.f32 %v141, %v160
  %165 = vrot.lane.b32.xlu0 %v39, 1
  %v166 = vpop.permute.xlu0 %165
  %167 = vrot.lane.b32.xlu0 %v60, 1
  %v168 = vpop.permute.xlu0 %167
  %169 = vrot.lane.b32.xlu0 %v40, 1
  %v170 = vpop.permute.xlu0 %169
  %171 = vrot.lane.b32.xlu0 %v61, 1
  %v172 = vpop.permute.xlu0 %171
  %vm173 = vcmp.lt.s32.totalorder %v73, 1
  %v174 = vsel %vm173, %v170, %v172
  %v175 = vsel %vm173, %v168, %v170
  %v176 = vsel %vm173, %v166, %v168
  %v177 = vsel %vm173, %v172, %v166
  %v178 = vlaneseq
  %v179 = vshrl.u32 %v178, 7
  %v180 = vsub.s32 3, %v179
  %v181 = vrot.slane %v41, %v180
  %v182 = vlaneseq
  %v183 = vshrl.u32 %v182, 7
  %v184 = vsub.s32 3, %v183
  %v185 = vrot.slane %v42, %v184
  %v186 = vlaneseq
  %v187 = vshrl.u32 %v186, 7
  %v188 = vsub.s32 3, %v187
  %v189 = vrot.slane %v43, %v188
  %v190 = vlaneseq
  %v191 = vshrl.u32 %v190, 7
  %v192 = vsub.s32 3, %v191
  %v193 = vrot.slane %v44, %v192
  %v194 = vmul.f32 %v177, %v181
  %v195 = vmul.f32 %v176, %v185
  %v196 = vmul.f32 %v175, %v189
  %v197 = vmul.f32 %v174, %v193
  %198 = vrot.lane.b32.xlu0 %v39, 127
  %v199 = vpop.permute.xlu0 %198
  %200 = vrot.lane.b32.xlu0 %v60, 127
  %v201 = vpop.permute.xlu0 %200
  %202 = vrot.lane.b32.xlu0 %v40, 127
  %v203 = vpop.permute.xlu0 %202
  %204 = vrot.lane.b32.xlu0 %v61, 127
  %v205 = vpop.permute.xlu0 %204
  %vm206 = vcmp.lt.s32.totalorder %v73, 127
  %v207 = vsel %vm206, %v203, %v205
  %v208 = vsel %vm206, %v201, %v203
  %v209 = vsel %vm206, %v199, %v201
  %v210 = vsel %vm206, %v205, %v199
  %v211 = vlaneseq
  %v212 = vshrl.u32 %v211, 7
  %v213 = vsub.s32 5, %v212
  %v214 = vrot.slane %v41, %v213
  %v215 = vlaneseq
  %v216 = vshrl.u32 %v215, 7
  %v217 = vsub.s32 5, %v216
  %v218 = vrot.slane %v42, %v217
  %v219 = vlaneseq
  %v220 = vshrl.u32 %v219, 7
  %v221 = vsub.s32 5, %v220
  %v222 = vrot.slane %v43, %v221
  %v223 = vlaneseq
  %v224 = vshrl.u32 %v223, 7
  %v225 = vsub.s32 5, %v224
  %v226 = vrot.slane %v44, %v225
  %v227 = vmul.f32 %v209, %v214
  %v228 = vmul.f32 %v208, %v218
  %v229 = vmul.f32 %v207, %v222
  %v230 = vmul.f32 %v210, %v226
  %231 = vrot.lane.b32.xlu0 %v39, 113
  %v232 = vpop.permute.xlu0 %231
  %233 = vrot.lane.b32.xlu0 %v60, 113
  %v234 = vpop.permute.xlu0 %233
  %235 = vrot.lane.b32.xlu0 %v40, 113
  %v236 = vpop.permute.xlu0 %235
  %237 = vrot.lane.b32.xlu0 %v61, 113
  %v238 = vpop.permute.xlu0 %237
  %vm239 = vcmp.lt.s32.totalorder %v73, 113
  %v240 = vsel %vm239, %v236, %v238
  %v241 = vsel %vm239, %v234, %v236
  %v242 = vsel %vm239, %v232, %v234
  %v243 = vsel %vm239, %v238, %v232
  %v244 = vlaneseq
  %v245 = vshrl.u32 %v244, 7
  %v246 = vsub.s32 6, %v245
  %v247 = vrot.slane %v41, %v246
  %v248 = vlaneseq
  %v249 = vshrl.u32 %v248, 7
  %v250 = vsub.s32 6, %v249
  %v251 = vrot.slane %v42, %v250
  %v252 = vlaneseq
  %v253 = vshrl.u32 %v252, 7
  %v254 = vsub.s32 6, %v253
  %v255 = vrot.slane %v43, %v254
  %v256 = vlaneseq
  %v257 = vshrl.u32 %v256, 7
  %v258 = vsub.s32 6, %v257
  %v259 = vrot.slane %v44, %v258
  %v260 = vmul.f32 %v242, %v247
  %v261 = vmul.f32 %v241, %v251
  %v262 = vmul.f32 %v240, %v255
  %v263 = vmul.f32 %v243, %v259
  %264 = vrot.lane.b32.xlu0 %v39, 112
  %v265 = vpop.permute.xlu0 %264
  %266 = vrot.lane.b32.xlu0 %v60, 112
  %v267 = vpop.permute.xlu0 %266
  %268 = vrot.lane.b32.xlu0 %v40, 112
  %v269 = vpop.permute.xlu0 %268
  %270 = vrot.lane.b32.xlu0 %v61, 112
  %v271 = vpop.permute.xlu0 %270
  %vm272 = vcmp.lt.s32.totalorder %v73, 112
  %v273 = vsel %vm272, %v269, %v271
  %v274 = vsel %vm272, %v267, %v269
  %v275 = vsel %vm272, %v265, %v267
  %v276 = vsel %vm272, %v271, %v265
  %v277 = vlaneseq
  %v278 = vshrl.u32 %v277, 7
  %v279 = vsub.s32 7, %v278
  %v280 = vrot.slane %v41, %v279
  %v281 = vlaneseq
  %v282 = vshrl.u32 %v281, 7
  %v283 = vsub.s32 7, %v282
  %v284 = vrot.slane %v42, %v283
  %v285 = vlaneseq
  %v286 = vshrl.u32 %v285, 7
  %v287 = vsub.s32 7, %v286
  %v288 = vrot.slane %v43, %v287
  %v289 = vlaneseq
  %v290 = vshrl.u32 %v289, 7
  %v291 = vsub.s32 7, %v290
  %v292 = vrot.slane %v44, %v291
  %v293 = vmul.f32 %v275, %v280
  %v294 = vmul.f32 %v274, %v284
  %v295 = vmul.f32 %v273, %v288
  %v296 = vmul.f32 %v276, %v292
  %297 = vrot.lane.b32.xlu0 %v39, 111
  %v298 = vpop.permute.xlu0 %297
  %299 = vrot.lane.b32.xlu0 %v60, 111
  %v300 = vpop.permute.xlu0 %299
  %301 = vrot.lane.b32.xlu0 %v40, 111
  %v302 = vpop.permute.xlu0 %301
  %303 = vrot.lane.b32.xlu0 %v61, 111
  %v304 = vpop.permute.xlu0 %303
  %vm305 = vcmp.lt.s32.totalorder %v73, 111
  %v306 = vsel %vm305, %v302, %v304
  %v307 = vsel %vm305, %v300, %v302
  %v308 = vsel %vm305, %v298, %v300
  %v309 = vsel %vm305, %v304, %v298
  %v310 = vlaneseq
  %v311 = vshrl.u32 %v310, 7
  %v312 = vsub.s32 0, %v311
  %v313 = vrot.slane %v45, %v312
  %v314 = vlaneseq
  %v315 = vshrl.u32 %v314, 7
  %v316 = vsub.s32 0, %v315
  %v317 = vrot.slane %v46, %v316
  %v318 = vlaneseq
  %v319 = vshrl.u32 %v318, 7
  %v320 = vsub.s32 0, %v319
  %v321 = vrot.slane %v47, %v320
  %v322 = vlaneseq
  %v323 = vshrl.u32 %v322, 7
  %v324 = vsub.s32 0, %v323
  %v325 = vrot.slane %v48, %v324
  %v326 = vmul.f32 %v308, %v313
  %v327 = vmul.f32 %v307, %v317
  %v328 = vmul.f32 %v306, %v321
  %v329 = vmul.f32 %v309, %v325
  %v334 = vrot.slane %v128, 4
  %v335 = vrot.slane %v129, 4
  %v336 = vrot.slane %v130, 4
  %v337 = vrot.slane %v131, 4
  %v346 = vrot.slane %v194, 4
  %v347 = vrot.slane %v195, 4
  %v348 = vrot.slane %v196, 4
  %v349 = vrot.slane %v197, 4
  %v358 = vrot.slane %v227, 4
  %v359 = vrot.slane %v228, 4
  %v360 = vrot.slane %v229, 4
  %v361 = vrot.slane %v230, 4
  %v370 = vrot.slane %v293, 4
  %v371 = vrot.slane %v294, 4
  %v372 = vrot.slane %v295, 4
  %v373 = vrot.slane %v296, 4
  %vm378 = vcmask 1043456
  %v379 = vsel %vm378, %v95, %v334
  %v380 = vsel %vm378, %v96, %v335
  %v381 = vsel %vm378, %v97, %v336
  %v382 = vsel %vm378, %v98, %v337
  %v383 = vsel %vm378, %v161, %v346
  %v384 = vsel %vm378, %v162, %v347
  %v385 = vsel %vm378, %v163, %v348
  %v386 = vsel %vm378, %v164, %v349
  %v387 = vsel %vm378, %v39, %v358
  %v388 = vsel %vm378, %v60, %v359
  %v389 = vsel %vm378, %v40, %v360
  %v390 = vsel %vm378, %v61, %v361
  %v391 = vsel %vm378, %v260, %v370
  %v392 = vsel %vm378, %v261, %v371
  %v393 = vsel %vm378, %v262, %v372
  %v394 = vsel %vm378, %v263, %v373
  %396 = vset.pattern.permute.xlu0 0
  %397 = vperm.xlu0 %396, %v51
  %v398 = vpop.permute.xlu0 %397
  %vm400 = vcmask 293888
  %v402 = vsel %vm400, %v49, 0
  %v405 = vsel %vm378, %v326, 0
  %v408 = vsel %vm378, %v327, 0
  %v411 = vsel %vm378, %v328, 0
  %v414 = vsel %vm378, %v329, 0
  %v416 = vand.u32 %v380, 4294901760
  %417 = vmatprep.subr.mxu0 %v416
  %v418 = vand.u32 %v379, 4294901760
  %419 = vmatpush1.msra.mxu0 %v418
  %v420 = vand.u32 %v384, 4294901760
  %421 = vmatprep.subr.mxu0 %v420
  %v422 = vand.u32 %v383, 4294901760
  %423 = vmatpush1.msra.mxu0 %v422
  %v424 = vand.u32 %v388, 4294901760
  %425 = vmatprep.subr.mxu0 %v424
  %v426 = vand.u32 %v387, 4294901760
  %427 = vmatpush1.msra.mxu0 %v426
  %v428 = vand.u32 %v392, 4294901760
  %429 = vmatprep.subr.mxu0 %v428
  %v430 = vand.u32 %v391, 4294901760
  %431 = vmatpush1.msra.mxu0 %v430
  %v432 = vand.u32 %v408, 4294901760
  %433 = vmatprep.subr.mxu0 %v432
  %v434 = vand.u32 %v405, 4294901760
  %435 = vmatpush1.msra.mxu0 %v434
  %436 = vmatprep.subr.mxu0 0.0
  %437 = vmatpush1.msra.mxu0 0.0
  %438 = vmatprep.subr.mxu0 0.0
  %439 = vmatpush1.msra.mxu0 0.0
  %440 = vmatprep.subr.mxu0 0.0
  %441 = vmatpush1.msra.mxu0 0.0
  %442 = vmatprep.subr.mxu0 0.0
  %443 = vmatpush1.msra.mxu0 0.0
  %444 = vmatprep.subr.mxu0 0.0
  %445 = vmatpush1.msra.mxu0 0.0
  %446 = vmatprep.subr.mxu0 0.0
  %447 = vmatpush1.msra.mxu0 0.0
  %448 = vmatprep.subr.mxu0 0.0
  %449 = vmatpush1.msra.mxu0 0.0
  %450 = vmatprep.subr.mxu0 0.0
  %451 = vmatpush1.msra.mxu0 0.0
  %452 = vmatprep.subr.mxu0 0.0
  %453 = vmatpush1.msra.mxu0 0.0
  %454 = vmatprep.subr.mxu0 0.0
  %455 = vmatpush1.msra.mxu0 0.0
  %456 = vmatprep.subr.mxu0 0.0
  %457 = vmatpush1.msra.mxu0 0.0
  %458 = vmatprep.subr.mxu0 0.0
  %459 = vmatpush1.msra.mxu0 0.0
  %460 = vmatprep.subr.mxu0 0.0
  %461 = vmatpush1.msra.mxu0 0.0
  %462 = vmatprep.subr.mxu0 0.0
  %463 = vmatpush1.msra.mxu0 0.0
  %464 = vmatprep.subr.mxu0 0.0
  %465 = vmatpush1.msra.mxu0 0.0
  %466 = vmatprep.subr.mxu0 0.0
  %467 = vmatpush1.msra.mxu0 0.0
  %468 = vmatprep.subr.mxu0 0.0
  %469 = vmatpush1.msra.mxu0 0.0
  %470 = vmatprep.subr.mxu0 0.0
  %471 = vmatpush1.msra.mxu0 0.0
  %472 = vmatprep.subr.mxu0 0.0
  %473 = vmatpush1.msra.mxu0 0.0
  %474 = vmatprep.subr.mxu0 0.0
  %475 = vmatpush1.msra.mxu0 0.0
  %476 = vmatprep.subr.mxu0 0.0
  %477 = vmatpush1.msra.mxu0 0.0
  %478 = vmatprep.subr.mxu0 0.0
  %479 = vmatpush1.msra.mxu0 0.0
  %480 = vmatprep.subr.mxu0 0.0
  %481 = vmatpush1.msra.mxu0 0.0
  %482 = vmatprep.subr.mxu0 0.0
  %483 = vmatpush1.msra.mxu0 0.0
  %484 = vmatprep.subr.mxu0 0.0
  %485 = vmatpush1.msra.mxu0 0.0
  %486 = vmatprep.subr.mxu0 0.0
  %487 = vmatpush1.msra.mxu0 0.0
  %488 = vmatprep.subr.mxu0 0.0
  %489 = vmatpush1.msra.mxu0 0.0
  %490 = vmatprep.mubr.f32.mxu0 0.0
  %v491 = vand.u32 %v402, 4294901760
  %v492 = vsub.f32 %v402, %v491
  %v493 = vand.u32 %v492, 4294901760
  %v494 = vsub.f32 %v492, %v493
  %v495 = vand.u32 %v494, 4294901760
  %496 = vmatmul.mubr.f32.gmra.mrb[0].mxu0 %v495
  %v497 = vpop.f32.mrb[0].mxu0
  %v498 = vadd.f32 %v398, %v497
  %v499 = vpop.f32.mrb[0].mxu0
  %v500 = vadd.f32 %v398, %v499
  %501 = vdwg.mxu0
  %v502 = vand.u32 %v380, 4294901760
  %v503 = vsub.f32 %v380, %v502
  %v504 = vand.u32 %v503, 4294901760
  %v505 = vsub.f32 %v503, %v504
  %v506 = vand.u32 %v505, 4294901760
  %507 = vmatprep.subr.mxu0 %v506
  %v508 = vand.u32 %v379, 4294901760
  %v509 = vsub.f32 %v379, %v508
  %v510 = vand.u32 %v509, 4294901760
  %v511 = vsub.f32 %v509, %v510
  %v512 = vand.u32 %v511, 4294901760
  %513 = vmatpush1.msra.mxu0 %v512
  %v514 = vand.u32 %v384, 4294901760
  %v515 = vsub.f32 %v384, %v514
  %v516 = vand.u32 %v515, 4294901760
  %v517 = vsub.f32 %v515, %v516
  %v518 = vand.u32 %v517, 4294901760
  %519 = vmatprep.subr.mxu0 %v518
  %v520 = vand.u32 %v383, 4294901760
  %v521 = vsub.f32 %v383, %v520
  %v522 = vand.u32 %v521, 4294901760
  %v523 = vsub.f32 %v521, %v522
  %v524 = vand.u32 %v523, 4294901760
  %525 = vmatpush1.msra.mxu0 %v524
  %v526 = vand.u32 %v388, 4294901760
  %v527 = vsub.f32 %v388, %v526
  %v528 = vand.u32 %v527, 4294901760
  %v529 = vsub.f32 %v527, %v528
  %v530 = vand.u32 %v529, 4294901760
  %531 = vmatprep.subr.mxu0 %v530
  %v532 = vand.u32 %v387, 4294901760
  %v533 = vsub.f32 %v387, %v532
  %v534 = vand.u32 %v533, 4294901760
  %v535 = vsub.f32 %v533, %v534
  %v536 = vand.u32 %v535, 4294901760
  %537 = vmatpush1.msra.mxu0 %v536
  %v538 = vand.u32 %v392, 4294901760
  %v539 = vsub.f32 %v392, %v538
  %v540 = vand.u32 %v539, 4294901760
  %v541 = vsub.f32 %v539, %v540
  %v542 = vand.u32 %v541, 4294901760
  %543 = vmatprep.subr.mxu0 %v542
  %v544 = vand.u32 %v391, 4294901760
  %v545 = vsub.f32 %v391, %v544
  %v546 = vand.u32 %v545, 4294901760
  %v547 = vsub.f32 %v545, %v546
  %v548 = vand.u32 %v547, 4294901760
  %549 = vmatpush1.msra.mxu0 %v548
  %v550 = vand.u32 %v408, 4294901760
  %v551 = vsub.f32 %v408, %v550
  %v552 = vand.u32 %v551, 4294901760
  %v553 = vsub.f32 %v551, %v552
  %v554 = vand.u32 %v553, 4294901760
  %555 = vmatprep.subr.mxu0 %v554
  %v556 = vand.u32 %v405, 4294901760
  %v557 = vsub.f32 %v405, %v556
  %v558 = vand.u32 %v557, 4294901760
  %v559 = vsub.f32 %v557, %v558
  %v560 = vand.u32 %v559, 4294901760
  %561 = vmatpush1.msra.mxu0 %v560
  %562 = vmatprep.subr.mxu0 0.0
  %563 = vmatpush1.msra.mxu0 0.0
  %564 = vmatprep.subr.mxu0 0.0
  %565 = vmatpush1.msra.mxu0 0.0
  %566 = vmatprep.subr.mxu0 0.0
  %567 = vmatpush1.msra.mxu0 0.0
  %568 = vmatprep.subr.mxu0 0.0
  %569 = vmatpush1.msra.mxu0 0.0
  %570 = vmatprep.subr.mxu0 0.0
  %571 = vmatpush1.msra.mxu0 0.0
  %572 = vmatprep.subr.mxu0 0.0
  %573 = vmatpush1.msra.mxu0 0.0
  %574 = vmatprep.subr.mxu0 0.0
  %575 = vmatpush1.msra.mxu0 0.0
  %576 = vmatprep.subr.mxu0 0.0
  %577 = vmatpush1.msra.mxu0 0.0
  %578 = vmatprep.subr.mxu0 0.0
  %579 = vmatpush1.msra.mxu0 0.0
  %580 = vmatprep.subr.mxu0 0.0
  %581 = vmatpush1.msra.mxu0 0.0
  %582 = vmatprep.subr.mxu0 0.0
  %583 = vmatpush1.msra.mxu0 0.0
  %584 = vmatprep.subr.mxu0 0.0
  %585 = vmatpush1.msra.mxu0 0.0
  %586 = vmatprep.subr.mxu0 0.0
  %587 = vmatpush1.msra.mxu0 0.0
  %588 = vmatprep.subr.mxu0 0.0
  %589 = vmatpush1.msra.mxu0 0.0
  %590 = vmatprep.subr.mxu0 0.0
  %591 = vmatpush1.msra.mxu0 0.0
  %592 = vmatprep.subr.mxu0 0.0
  %593 = vmatpush1.msra.mxu0 0.0
  %594 = vmatprep.subr.mxu0 0.0
  %595 = vmatpush1.msra.mxu0 0.0
  %596 = vmatprep.subr.mxu0 0.0
  %597 = vmatpush1.msra.mxu0 0.0
  %598 = vmatprep.subr.mxu0 0.0
  %599 = vmatpush1.msra.mxu0 0.0
  %600 = vmatprep.subr.mxu0 0.0
  %601 = vmatpush1.msra.mxu0 0.0
  %602 = vmatprep.subr.mxu0 0.0
  %603 = vmatpush1.msra.mxu0 0.0
  %604 = vmatprep.subr.mxu0 0.0
  %605 = vmatpush1.msra.mxu0 0.0
  %606 = vmatprep.subr.mxu0 0.0
  %607 = vmatpush1.msra.mxu0 0.0
  %608 = vmatprep.subr.mxu0 0.0
  %609 = vmatpush1.msra.mxu0 0.0
  %610 = vmatprep.subr.mxu0 0.0
  %611 = vmatpush1.msra.mxu0 0.0
  %612 = vmatprep.subr.mxu0 0.0
  %613 = vmatpush1.msra.mxu0 0.0
  %614 = vmatprep.subr.mxu0 0.0
  %615 = vmatpush1.msra.mxu0 0.0
  %616 = vmatprep.mubr.f32.mxu0 0.0
  %v617 = vand.u32 %v402, 4294901760
  %618 = vmatmul.mubr.f32.gmra.mrb[0].mxu0 %v617
  %v619 = vpop.f32.mrb[0].mxu0
  %v620 = vadd.f32 %v498, %v619
  %v621 = vpop.f32.mrb[0].mxu0
  %v622 = vadd.f32 %v500, %v621
  %623 = vdwg.mxu0
  %v624 = vand.u32 %v380, 4294901760
  %v625 = vsub.f32 %v380, %v624
  %626 = vmatprep.subr.mxu0 %v625
  %v627 = vand.u32 %v379, 4294901760
  %v628 = vsub.f32 %v379, %v627
  %629 = vmatpush1.msra.mxu0 %v628
  %v630 = vand.u32 %v384, 4294901760
  %v631 = vsub.f32 %v384, %v630
  %632 = vmatprep.subr.mxu0 %v631
  %v633 = vand.u32 %v383, 4294901760
  %v634 = vsub.f32 %v383, %v633
  %635 = vmatpush1.msra.mxu0 %v634
  %v636 = vand.u32 %v388, 4294901760
  %v637 = vsub.f32 %v388, %v636
  %638 = vmatprep.subr.mxu0 %v637
  %v639 = vand.u32 %v387, 4294901760
  %v640 = vsub.f32 %v387, %v639
  %641 = vmatpush1.msra.mxu0 %v640
  %v642 = vand.u32 %v392, 4294901760
  %v643 = vsub.f32 %v392, %v642
  %644 = vmatprep.subr.mxu0 %v643
  %v645 = vand.u32 %v391, 4294901760
  %v646 = vsub.f32 %v391, %v645
  %647 = vmatpush1.msra.mxu0 %v646
  %v648 = vand.u32 %v408, 4294901760
  %v649 = vsub.f32 %v408, %v648
  %650 = vmatprep.subr.mxu0 %v649
  %v651 = vand.u32 %v405, 4294901760
  %v652 = vsub.f32 %v405, %v651
  %653 = vmatpush1.msra.mxu0 %v652
  %654 = vmatprep.subr.mxu0 0.0
  %655 = vmatpush1.msra.mxu0 0.0
  %656 = vmatprep.subr.mxu0 0.0
  %657 = vmatpush1.msra.mxu0 0.0
  %658 = vmatprep.subr.mxu0 0.0
  %659 = vmatpush1.msra.mxu0 0.0
  %660 = vmatprep.subr.mxu0 0.0
  %661 = vmatpush1.msra.mxu0 0.0
  %662 = vmatprep.subr.mxu0 0.0
  %663 = vmatpush1.msra.mxu0 0.0
  %664 = vmatprep.subr.mxu0 0.0
  %665 = vmatpush1.msra.mxu0 0.0
  %666 = vmatprep.subr.mxu0 0.0
  %667 = vmatpush1.msra.mxu0 0.0
  %668 = vmatprep.subr.mxu0 0.0
  %669 = vmatpush1.msra.mxu0 0.0
  %670 = vmatprep.subr.mxu0 0.0
  %671 = vmatpush1.msra.mxu0 0.0
  %672 = vmatprep.subr.mxu0 0.0
  %673 = vmatpush1.msra.mxu0 0.0
  %674 = vmatprep.subr.mxu0 0.0
  %675 = vmatpush1.msra.mxu0 0.0
  %676 = vmatprep.subr.mxu0 0.0
  %677 = vmatpush1.msra.mxu0 0.0
  %678 = vmatprep.subr.mxu0 0.0
  %679 = vmatpush1.msra.mxu0 0.0
  %680 = vmatprep.subr.mxu0 0.0
  %681 = vmatpush1.msra.mxu0 0.0
  %682 = vmatprep.subr.mxu0 0.0
  %683 = vmatpush1.msra.mxu0 0.0
  %684 = vmatprep.subr.mxu0 0.0
  %685 = vmatpush1.msra.mxu0 0.0
  %686 = vmatprep.subr.mxu0 0.0
  %687 = vmatpush1.msra.mxu0 0.0
  %688 = vmatprep.subr.mxu0 0.0
  %689 = vmatpush1.msra.mxu0 0.0
  %690 = vmatprep.subr.mxu0 0.0
  %691 = vmatpush1.msra.mxu0 0.0
  %692 = vmatprep.subr.mxu0 0.0
  %693 = vmatpush1.msra.mxu0 0.0
  %694 = vmatprep.subr.mxu0 0.0
  %695 = vmatpush1.msra.mxu0 0.0
  %696 = vmatprep.subr.mxu0 0.0
  %697 = vmatpush1.msra.mxu0 0.0
  %698 = vmatprep.subr.mxu0 0.0
  %699 = vmatpush1.msra.mxu0 0.0
  %700 = vmatprep.subr.mxu0 0.0
  %701 = vmatpush1.msra.mxu0 0.0
  %702 = vmatprep.subr.mxu0 0.0
  %703 = vmatpush1.msra.mxu0 0.0
  %704 = vmatprep.subr.mxu0 0.0
  %705 = vmatpush1.msra.mxu0 0.0
  %706 = vmatprep.subr.mxu0 0.0
  %707 = vmatpush1.msra.mxu0 0.0
  %708 = vmatprep.mubr.f32.mxu0 0.0
  %v709 = vand.u32 %v402, 4294901760
  %v710 = vsub.f32 %v402, %v709
  %711 = vmatmul.mubr.f32.gmra.mrb[0].mxu0 %v710
  %v712 = vpop.f32.mrb[0].mxu0
  %v713 = vadd.f32 %v620, %v712
  %v714 = vpop.f32.mrb[0].mxu0
  %v715 = vadd.f32 %v622, %v714
  %716 = vdwg.mxu0
  %v717 = vand.u32 %v380, 4294901760
  %718 = vmatprep.subr.mxu0 %v717
  %v719 = vand.u32 %v379, 4294901760
  %720 = vmatpush1.msra.mxu0 %v719
  %v721 = vand.u32 %v384, 4294901760
  %722 = vmatprep.subr.mxu0 %v721
  %v723 = vand.u32 %v383, 4294901760
  %724 = vmatpush1.msra.mxu0 %v723
  %v725 = vand.u32 %v388, 4294901760
  %726 = vmatprep.subr.mxu0 %v725
  %v727 = vand.u32 %v387, 4294901760
  %728 = vmatpush1.msra.mxu0 %v727
  %v729 = vand.u32 %v392, 4294901760
  %730 = vmatprep.subr.mxu0 %v729
  %v731 = vand.u32 %v391, 4294901760
  %732 = vmatpush1.msra.mxu0 %v731
  %v733 = vand.u32 %v408, 4294901760
  %734 = vmatprep.subr.mxu0 %v733
  %v735 = vand.u32 %v405, 4294901760
  %736 = vmatpush1.msra.mxu0 %v735
  %737 = vmatprep.subr.mxu0 0.0
  %738 = vmatpush1.msra.mxu0 0.0
  %739 = vmatprep.subr.mxu0 0.0
  %740 = vmatpush1.msra.mxu0 0.0
  %741 = vmatprep.subr.mxu0 0.0
  %742 = vmatpush1.msra.mxu0 0.0
  %743 = vmatprep.subr.mxu0 0.0
  %744 = vmatpush1.msra.mxu0 0.0
  %745 = vmatprep.subr.mxu0 0.0
  %746 = vmatpush1.msra.mxu0 0.0
  %747 = vmatprep.subr.mxu0 0.0
  %748 = vmatpush1.msra.mxu0 0.0
  %749 = vmatprep.subr.mxu0 0.0
  %750 = vmatpush1.msra.mxu0 0.0
  %751 = vmatprep.subr.mxu0 0.0
  %752 = vmatpush1.msra.mxu0 0.0
  %753 = vmatprep.subr.mxu0 0.0
  %754 = vmatpush1.msra.mxu0 0.0
  %755 = vmatprep.subr.mxu0 0.0
  %756 = vmatpush1.msra.mxu0 0.0
  %757 = vmatprep.subr.mxu0 0.0
  %758 = vmatpush1.msra.mxu0 0.0
  %759 = vmatprep.subr.mxu0 0.0
  %760 = vmatpush1.msra.mxu0 0.0
  %761 = vmatprep.subr.mxu0 0.0
  %762 = vmatpush1.msra.mxu0 0.0
  %763 = vmatprep.subr.mxu0 0.0
  %764 = vmatpush1.msra.mxu0 0.0
  %765 = vmatprep.subr.mxu0 0.0
  %766 = vmatpush1.msra.mxu0 0.0
  %767 = vmatprep.subr.mxu0 0.0
  %768 = vmatpush1.msra.mxu0 0.0
  %769 = vmatprep.subr.mxu0 0.0
  %770 = vmatpush1.msra.mxu0 0.0
  %771 = vmatprep.subr.mxu0 0.0
  %772 = vmatpush1.msra.mxu0 0.0
  %773 = vmatprep.subr.mxu0 0.0
  %774 = vmatpush1.msra.mxu0 0.0
  %775 = vmatprep.subr.mxu0 0.0
  %776 = vmatpush1.msra.mxu0 0.0
  %777 = vmatprep.subr.mxu0 0.0
  %778 = vmatpush1.msra.mxu0 0.0
  %779 = vmatprep.subr.mxu0 0.0
  %780 = vmatpush1.msra.mxu0 0.0
  %781 = vmatprep.subr.mxu0 0.0
  %782 = vmatpush1.msra.mxu0 0.0
  %783 = vmatprep.subr.mxu0 0.0
  %784 = vmatpush1.msra.mxu0 0.0
  %785 = vmatprep.subr.mxu0 0.0
  %786 = vmatpush1.msra.mxu0 0.0
  %787 = vmatprep.subr.mxu0 0.0
  %788 = vmatpush1.msra.mxu0 0.0
  %789 = vmatprep.subr.mxu0 0.0
  %790 = vmatpush1.msra.mxu0 0.0
  %791 = vmatprep.mubr.f32.mxu0 0.0
  %v792 = vand.u32 %v402, 4294901760
  %v793 = vsub.f32 %v402, %v792
  %v794 = vand.u32 %v793, 4294901760
  %795 = vmatmul.mubr.f32.gmra.mrb[0].mxu0 %v794
  %v796 = vpop.f32.mrb[0].mxu0
  %v797 = vadd.f32 %v713, %v796
  %v798 = vpop.f32.mrb[0].mxu0
  %v799 = vadd.f32 %v715, %v798
  %800 = vdwg.mxu0
  %v801 = vand.u32 %v380, 4294901760
  %v802 = vsub.f32 %v380, %v801
  %v803 = vand.u32 %v802, 4294901760
  %804 = vmatprep.subr.mxu0 %v803
  %v805 = vand.u32 %v379, 4294901760
  %v806 = vsub.f32 %v379, %v805
  %v807 = vand.u32 %v806, 4294901760
  %808 = vmatpush1.msra.mxu0 %v807
  %v809 = vand.u32 %v384, 4294901760
  %v810 = vsub.f32 %v384, %v809
  %v811 = vand.u32 %v810, 4294901760
  %812 = vmatprep.subr.mxu0 %v811
  %v813 = vand.u32 %v383, 4294901760
  %v814 = vsub.f32 %v383, %v813
  %v815 = vand.u32 %v814, 4294901760
  %816 = vmatpush1.msra.mxu0 %v815
  %v817 = vand.u32 %v388, 4294901760
  %v818 = vsub.f32 %v388, %v817
  %v819 = vand.u32 %v818, 4294901760
  %820 = vmatprep.subr.mxu0 %v819
  %v821 = vand.u32 %v387, 4294901760
  %v822 = vsub.f32 %v387, %v821
  %v823 = vand.u32 %v822, 4294901760
  %824 = vmatpush1.msra.mxu0 %v823
  %v825 = vand.u32 %v392, 4294901760
  %v826 = vsub.f32 %v392, %v825
  %v827 = vand.u32 %v826, 4294901760
  %828 = vmatprep.subr.mxu0 %v827
  %v829 = vand.u32 %v391, 4294901760
  %v830 = vsub.f32 %v391, %v829
  %v831 = vand.u32 %v830, 4294901760
  %832 = vmatpush1.msra.mxu0 %v831
  %v833 = vand.u32 %v408, 4294901760
  %v834 = vsub.f32 %v408, %v833
  %v835 = vand.u32 %v834, 4294901760
  %836 = vmatprep.subr.mxu0 %v835
  %v837 = vand.u32 %v405, 4294901760
  %v838 = vsub.f32 %v405, %v837
  %v839 = vand.u32 %v838, 4294901760
  %840 = vmatpush1.msra.mxu0 %v839
  %841 = vmatprep.subr.mxu0 0.0
  %842 = vmatpush1.msra.mxu0 0.0
  %843 = vmatprep.subr.mxu0 0.0
  %844 = vmatpush1.msra.mxu0 0.0
  %845 = vmatprep.subr.mxu0 0.0
  %846 = vmatpush1.msra.mxu0 0.0
  %847 = vmatprep.subr.mxu0 0.0
  %848 = vmatpush1.msra.mxu0 0.0
  %849 = vmatprep.subr.mxu0 0.0
  %850 = vmatpush1.msra.mxu0 0.0
  %851 = vmatprep.subr.mxu0 0.0
  %852 = vmatpush1.msra.mxu0 0.0
  %853 = vmatprep.subr.mxu0 0.0
  %854 = vmatpush1.msra.mxu0 0.0
  %855 = vmatprep.subr.mxu0 0.0
  %856 = vmatpush1.msra.mxu0 0.0
  %857 = vmatprep.subr.mxu0 0.0
  %858 = vmatpush1.msra.mxu0 0.0
  %859 = vmatprep.subr.mxu0 0.0
  %860 = vmatpush1.msra.mxu0 0.0
  %861 = vmatprep.subr.mxu0 0.0
  %862 = vmatpush1.msra.mxu0 0.0
  %863 = vmatprep.subr.mxu0 0.0
  %864 = vmatpush1.msra.mxu0 0.0
  %865 = vmatprep.subr.mxu0 0.0
  %866 = vmatpush1.msra.mxu0 0.0
  %867 = vmatprep.subr.mxu0 0.0
  %868 = vmatpush1.msra.mxu0 0.0
  %869 = vmatprep.subr.mxu0 0.0
  %870 = vmatpush1.msra.mxu0 0.0
  %871 = vmatprep.subr.mxu0 0.0
  %872 = vmatpush1.msra.mxu0 0.0
  %873 = vmatprep.subr.mxu0 0.0
  %874 = vmatpush1.msra.mxu0 0.0
  %875 = vmatprep.subr.mxu0 0.0
  %876 = vmatpush1.msra.mxu0 0.0
  %877 = vmatprep.subr.mxu0 0.0
  %878 = vmatpush1.msra.mxu0 0.0
  %879 = vmatprep.subr.mxu0 0.0
  %880 = vmatpush1.msra.mxu0 0.0
  %881 = vmatprep.subr.mxu0 0.0
  %882 = vmatpush1.msra.mxu0 0.0
  %883 = vmatprep.subr.mxu0 0.0
  %884 = vmatpush1.msra.mxu0 0.0
  %885 = vmatprep.subr.mxu0 0.0
  %886 = vmatpush1.msra.mxu0 0.0
  %887 = vmatprep.subr.mxu0 0.0
  %888 = vmatpush1.msra.mxu0 0.0
  %889 = vmatprep.subr.mxu0 0.0
  %890 = vmatpush1.msra.mxu0 0.0
  %891 = vmatprep.subr.mxu0 0.0
  %892 = vmatpush1.msra.mxu0 0.0
  %893 = vmatprep.subr.mxu0 0.0
  %894 = vmatpush1.msra.mxu0 0.0
  %895 = vmatprep.mubr.f32.mxu0 0.0
  %v896 = vand.u32 %v402, 4294901760
  %897 = vmatmul.mubr.f32.gmra.mrb[0].mxu0 %v896
  %v898 = vpop.f32.mrb[0].mxu0
  %v899 = vadd.f32 %v797, %v898
  %v900 = vpop.f32.mrb[0].mxu0
  %v901 = vadd.f32 %v799, %v900
  %902 = vdwg.mxu0
  %v903 = vand.u32 %v380, 4294901760
  %904 = vmatprep.subr.mxu0 %v903
  %v905 = vand.u32 %v379, 4294901760
  %906 = vmatpush1.msra.mxu0 %v905
  %v907 = vand.u32 %v384, 4294901760
  %908 = vmatprep.subr.mxu0 %v907
  %v909 = vand.u32 %v383, 4294901760
  %910 = vmatpush1.msra.mxu0 %v909
  %v911 = vand.u32 %v388, 4294901760
  %912 = vmatprep.subr.mxu0 %v911
  %v913 = vand.u32 %v387, 4294901760
  %914 = vmatpush1.msra.mxu0 %v913
  %v915 = vand.u32 %v392, 4294901760
  %916 = vmatprep.subr.mxu0 %v915
  %v917 = vand.u32 %v391, 4294901760
  %918 = vmatpush1.msra.mxu0 %v917
  %v919 = vand.u32 %v408, 4294901760
  %920 = vmatprep.subr.mxu0 %v919
  %v921 = vand.u32 %v405, 4294901760
  %922 = vmatpush1.msra.mxu0 %v921
  %923 = vmatprep.subr.mxu0 0.0
  %924 = vmatpush1.msra.mxu0 0.0
  %925 = vmatprep.subr.mxu0 0.0
  %926 = vmatpush1.msra.mxu0 0.0
  %927 = vmatprep.subr.mxu0 0.0
  %928 = vmatpush1.msra.mxu0 0.0
  %929 = vmatprep.subr.mxu0 0.0
  %930 = vmatpush1.msra.mxu0 0.0
  %931 = vmatprep.subr.mxu0 0.0
  %932 = vmatpush1.msra.mxu0 0.0
  %933 = vmatprep.subr.mxu0 0.0
  %934 = vmatpush1.msra.mxu0 0.0
  %935 = vmatprep.subr.mxu0 0.0
  %936 = vmatpush1.msra.mxu0 0.0
  %937 = vmatprep.subr.mxu0 0.0
  %938 = vmatpush1.msra.mxu0 0.0
  %939 = vmatprep.subr.mxu0 0.0
  %940 = vmatpush1.msra.mxu0 0.0
  %941 = vmatprep.subr.mxu0 0.0
  %942 = vmatpush1.msra.mxu0 0.0
  %943 = vmatprep.subr.mxu0 0.0
  %944 = vmatpush1.msra.mxu0 0.0
  %945 = vmatprep.subr.mxu0 0.0
  %946 = vmatpush1.msra.mxu0 0.0
  %947 = vmatprep.subr.mxu0 0.0
  %948 = vmatpush1.msra.mxu0 0.0
  %949 = vmatprep.subr.mxu0 0.0
  %950 = vmatpush1.msra.mxu0 0.0
  %951 = vmatprep.subr.mxu0 0.0
  %952 = vmatpush1.msra.mxu0 0.0
  %953 = vmatprep.subr.mxu0 0.0
  %954 = vmatpush1.msra.mxu0 0.0
  %955 = vmatprep.subr.mxu0 0.0
  %956 = vmatpush1.msra.mxu0 0.0
  %957 = vmatprep.subr.mxu0 0.0
  %958 = vmatpush1.msra.mxu0 0.0
  %959 = vmatprep.subr.mxu0 0.0
  %960 = vmatpush1.msra.mxu0 0.0
  %961 = vmatprep.subr.mxu0 0.0
  %962 = vmatpush1.msra.mxu0 0.0
  %963 = vmatprep.subr.mxu0 0.0
  %964 = vmatpush1.msra.mxu0 0.0
  %965 = vmatprep.subr.mxu0 0.0
  %966 = vmatpush1.msra.mxu0 0.0
  %967 = vmatprep.subr.mxu0 0.0
  %968 = vmatpush1.msra.mxu0 0.0
  %969 = vmatprep.subr.mxu0 0.0
  %970 = vmatpush1.msra.mxu0 0.0
  %971 = vmatprep.subr.mxu0 0.0
  %972 = vmatpush1.msra.mxu0 0.0
  %973 = vmatprep.subr.mxu0 0.0
  %974 = vmatpush1.msra.mxu0 0.0
  %975 = vmatprep.subr.mxu0 0.0
  %976 = vmatpush1.msra.mxu0 0.0
  %977 = vmatprep.mubr.f32.mxu0 0.0
  %v978 = vand.u32 %v402, 4294901760
  %979 = vmatmul.mubr.f32.gmra.mrb[0].mxu0 %v978
  %v980 = vpop.f32.mrb[0].mxu0
  %v981 = vadd.f32 %v899, %v980
  %v982 = vpop.f32.mrb[0].mxu0
  %v983 = vadd.f32 %v901, %v982
  %984 = vdwg.mxu0
  %v985 = vand.u32 %v382, 4294901760
  %986 = vmatprep.subr.mxu0 %v985
  %v987 = vand.u32 %v381, 4294901760
  %988 = vmatpush1.msra.mxu0 %v987
  %v989 = vand.u32 %v386, 4294901760
  %990 = vmatprep.subr.mxu0 %v989
  %v991 = vand.u32 %v385, 4294901760
  %992 = vmatpush1.msra.mxu0 %v991
  %v993 = vand.u32 %v390, 4294901760
  %994 = vmatprep.subr.mxu0 %v993
  %v995 = vand.u32 %v389, 4294901760
  %996 = vmatpush1.msra.mxu0 %v995
  %v997 = vand.u32 %v394, 4294901760
  %998 = vmatprep.subr.mxu0 %v997
  %v999 = vand.u32 %v393, 4294901760
  %1000 = vmatpush1.msra.mxu0 %v999
  %v1001 = vand.u32 %v414, 4294901760
  %1002 = vmatprep.subr.mxu0 %v1001
  %v1003 = vand.u32 %v411, 4294901760
  %1004 = vmatpush1.msra.mxu0 %v1003
  %1005 = vmatprep.subr.mxu0 0.0
  %1006 = vmatpush1.msra.mxu0 0.0
  %1007 = vmatprep.subr.mxu0 0.0
  %1008 = vmatpush1.msra.mxu0 0.0
  %1009 = vmatprep.subr.mxu0 0.0
  %1010 = vmatpush1.msra.mxu0 0.0
  %1011 = vmatprep.subr.mxu0 0.0
  %1012 = vmatpush1.msra.mxu0 0.0
  %1013 = vmatprep.subr.mxu0 0.0
  %1014 = vmatpush1.msra.mxu0 0.0
  %1015 = vmatprep.subr.mxu0 0.0
  %1016 = vmatpush1.msra.mxu0 0.0
  %1017 = vmatprep.subr.mxu0 0.0
  %1018 = vmatpush1.msra.mxu0 0.0
  %1019 = vmatprep.subr.mxu0 0.0
  %1020 = vmatpush1.msra.mxu0 0.0
  %1021 = vmatprep.subr.mxu0 0.0
  %1022 = vmatpush1.msra.mxu0 0.0
  %1023 = vmatprep.subr.mxu0 0.0
  %1024 = vmatpush1.msra.mxu0 0.0
  %1025 = vmatprep.subr.mxu0 0.0
  %1026 = vmatpush1.msra.mxu0 0.0
  %1027 = vmatprep.subr.mxu0 0.0
  %1028 = vmatpush1.msra.mxu0 0.0
  %1029 = vmatprep.subr.mxu0 0.0
  %1030 = vmatpush1.msra.mxu0 0.0
  %1031 = vmatprep.subr.mxu0 0.0
  %1032 = vmatpush1.msra.mxu0 0.0
  %1033 = vmatprep.subr.mxu0 0.0
  %1034 = vmatpush1.msra.mxu0 0.0
  %1035 = vmatprep.subr.mxu0 0.0
  %1036 = vmatpush1.msra.mxu0 0.0
  %1037 = vmatprep.subr.mxu0 0.0
  %1038 = vmatpush1.msra.mxu0 0.0
  %1039 = vmatprep.subr.mxu0 0.0
  %1040 = vmatpush1.msra.mxu0 0.0
  %1041 = vmatprep.subr.mxu0 0.0
  %1042 = vmatpush1.msra.mxu0 0.0
  %1043 = vmatprep.subr.mxu0 0.0
  %1044 = vmatpush1.msra.mxu0 0.0
  %1045 = vmatprep.subr.mxu0 0.0
  %1046 = vmatpush1.msra.mxu0 0.0
  %1047 = vmatprep.subr.mxu0 0.0
  %1048 = vmatpush1.msra.mxu0 0.0
  %1049 = vmatprep.subr.mxu0 0.0
  %1050 = vmatpush1.msra.mxu0 0.0
  %1051 = vmatprep.subr.mxu0 0.0
  %1052 = vmatpush1.msra.mxu0 0.0
  %1053 = vmatprep.subr.mxu0 0.0
  %1054 = vmatpush1.msra.mxu0 0.0
  %1055 = vmatprep.subr.mxu0 0.0
  %1056 = vmatpush1.msra.mxu0 0.0
  %1057 = vmatprep.subr.mxu0 0.0
  %1058 = vmatpush1.msra.mxu0 0.0
  %1059 = vmatprep.mubr.f32.mxu0 0.0
  %v1060 = vand.u32 %v402, 4294901760
  %v1061 = vsub.f32 %v402, %v1060
  %v1062 = vand.u32 %v1061, 4294901760
  %v1063 = vsub.f32 %v1061, %v1062
  %v1064 = vand.u32 %v1063, 4294901760
  %1065 = vmatmul.mubr.f32.gmra.mrb[0].mxu0 %v1064
  %v1066 = vpop.f32.mrb[0].mxu0
  %v1067 = vadd.f32 %v398, %v1066
  %v1068 = vpop.f32.mrb[0].mxu0
  %v1069 = vadd.f32 %v398, %v1068
  %1070 = vdwg.mxu0
  %v1071 = vand.u32 %v382, 4294901760
  %v1072 = vsub.f32 %v382, %v1071
  %v1073 = vand.u32 %v1072, 4294901760
  %v1074 = vsub.f32 %v1072, %v1073
  %v1075 = vand.u32 %v1074, 4294901760
  %1076 = vmatprep.subr.mxu0 %v1075
  %v1077 = vand.u32 %v381, 4294901760
  %v1078 = vsub.f32 %v381, %v1077
  %v1079 = vand.u32 %v1078, 4294901760
  %v1080 = vsub.f32 %v1078, %v1079
  %v1081 = vand.u32 %v1080, 4294901760
  %1082 = vmatpush1.msra.mxu0 %v1081
  %v1083 = vand.u32 %v386, 4294901760
  %v1084 = vsub.f32 %v386, %v1083
  %v1085 = vand.u32 %v1084, 4294901760
  %v1086 = vsub.f32 %v1084, %v1085
  %v1087 = vand.u32 %v1086, 4294901760
  %1088 = vmatprep.subr.mxu0 %v1087
  %v1089 = vand.u32 %v385, 4294901760
  %v1090 = vsub.f32 %v385, %v1089
  %v1091 = vand.u32 %v1090, 4294901760
  %v1092 = vsub.f32 %v1090, %v1091
  %v1093 = vand.u32 %v1092, 4294901760
  %1094 = vmatpush1.msra.mxu0 %v1093
  %v1095 = vand.u32 %v390, 4294901760
  %v1096 = vsub.f32 %v390, %v1095
  %v1097 = vand.u32 %v1096, 4294901760
  %v1098 = vsub.f32 %v1096, %v1097
  %v1099 = vand.u32 %v1098, 4294901760
  %1100 = vmatprep.subr.mxu0 %v1099
  %v1101 = vand.u32 %v389, 4294901760
  %v1102 = vsub.f32 %v389, %v1101
  %v1103 = vand.u32 %v1102, 4294901760
  %v1104 = vsub.f32 %v1102, %v1103
  %v1105 = vand.u32 %v1104, 4294901760
  %1106 = vmatpush1.msra.mxu0 %v1105
  %v1107 = vand.u32 %v394, 4294901760
  %v1108 = vsub.f32 %v394, %v1107
  %v1109 = vand.u32 %v1108, 4294901760
  %v1110 = vsub.f32 %v1108, %v1109
  %v1111 = vand.u32 %v1110, 4294901760
  %1112 = vmatprep.subr.mxu0 %v1111
  %v1113 = vand.u32 %v393, 4294901760
  %v1114 = vsub.f32 %v393, %v1113
  %v1115 = vand.u32 %v1114, 4294901760
  %v1116 = vsub.f32 %v1114, %v1115
  %v1117 = vand.u32 %v1116, 4294901760
  %1118 = vmatpush1.msra.mxu0 %v1117
  %v1119 = vand.u32 %v414, 4294901760
  %v1120 = vsub.f32 %v414, %v1119
  %v1121 = vand.u32 %v1120, 4294901760
  %v1122 = vsub.f32 %v1120, %v1121
  %v1123 = vand.u32 %v1122, 4294901760
  %1124 = vmatprep.subr.mxu0 %v1123
  %v1125 = vand.u32 %v411, 4294901760
  %v1126 = vsub.f32 %v411, %v1125
  %v1127 = vand.u32 %v1126, 4294901760
  %v1128 = vsub.f32 %v1126, %v1127
  %v1129 = vand.u32 %v1128, 4294901760
  %1130 = vmatpush1.msra.mxu0 %v1129
  %1131 = vmatprep.subr.mxu0 0.0
  %1132 = vmatpush1.msra.mxu0 0.0
  %1133 = vmatprep.subr.mxu0 0.0
  %1134 = vmatpush1.msra.mxu0 0.0
  %1135 = vmatprep.subr.mxu0 0.0
  %1136 = vmatpush1.msra.mxu0 0.0
  %1137 = vmatprep.subr.mxu0 0.0
  %1138 = vmatpush1.msra.mxu0 0.0
  %1139 = vmatprep.subr.mxu0 0.0
  %1140 = vmatpush1.msra.mxu0 0.0
  %1141 = vmatprep.subr.mxu0 0.0
  %1142 = vmatpush1.msra.mxu0 0.0
  %1143 = vmatprep.subr.mxu0 0.0
  %1144 = vmatpush1.msra.mxu0 0.0
  %1145 = vmatprep.subr.mxu0 0.0
  %1146 = vmatpush1.msra.mxu0 0.0
  %1147 = vmatprep.subr.mxu0 0.0
  %1148 = vmatpush1.msra.mxu0 0.0
  %1149 = vmatprep.subr.mxu0 0.0
  %1150 = vmatpush1.msra.mxu0 0.0
  %1151 = vmatprep.subr.mxu0 0.0
  %1152 = vmatpush1.msra.mxu0 0.0
  %1153 = vmatprep.subr.mxu0 0.0
  %1154 = vmatpush1.msra.mxu0 0.0
  %1155 = vmatprep.subr.mxu0 0.0
  %1156 = vmatpush1.msra.mxu0 0.0
  %1157 = vmatprep.subr.mxu0 0.0
  %1158 = vmatpush1.msra.mxu0 0.0
  %1159 = vmatprep.subr.mxu0 0.0
  %1160 = vmatpush1.msra.mxu0 0.0
  %1161 = vmatprep.subr.mxu0 0.0
  %1162 = vmatpush1.msra.mxu0 0.0
  %1163 = vmatprep.subr.mxu0 0.0
  %1164 = vmatpush1.msra.mxu0 0.0
  %1165 = vmatprep.subr.mxu0 0.0
  %1166 = vmatpush1.msra.mxu0 0.0
  %1167 = vmatprep.subr.mxu0 0.0
  %1168 = vmatpush1.msra.mxu0 0.0
  %1169 = vmatprep.subr.mxu0 0.0
  %1170 = vmatpush1.msra.mxu0 0.0
  %1171 = vmatprep.subr.mxu0 0.0
  %1172 = vmatpush1.msra.mxu0 0.0
  %1173 = vmatprep.subr.mxu0 0.0
  %1174 = vmatpush1.msra.mxu0 0.0
  %1175 = vmatprep.subr.mxu0 0.0
  %1176 = vmatpush1.msra.mxu0 0.0
  %1177 = vmatprep.subr.mxu0 0.0
  %1178 = vmatpush1.msra.mxu0 0.0
  %1179 = vmatprep.subr.mxu0 0.0
  %1180 = vmatpush1.msra.mxu0 0.0
  %1181 = vmatprep.subr.mxu0 0.0
  %1182 = vmatpush1.msra.mxu0 0.0
  %1183 = vmatprep.subr.mxu0 0.0
  %1184 = vmatpush1.msra.mxu0 0.0
  %1185 = vmatprep.mubr.f32.mxu0 0.0
  %v1186 = vand.u32 %v402, 4294901760
  %1187 = vmatmul.mubr.f32.gmra.mrb[0].mxu0 %v1186
  %v1188 = vpop.f32.mrb[0].mxu0
  %v1189 = vadd.f32 %v1067, %v1188
  %v1190 = vpop.f32.mrb[0].mxu0
  %v1191 = vadd.f32 %v1069, %v1190
  %1192 = vdwg.mxu0
  %v1193 = vand.u32 %v382, 4294901760
  %v1194 = vsub.f32 %v382, %v1193
  %1195 = vmatprep.subr.mxu0 %v1194
  %v1196 = vand.u32 %v381, 4294901760
  %v1197 = vsub.f32 %v381, %v1196
  %1198 = vmatpush1.msra.mxu0 %v1197
  %v1199 = vand.u32 %v386, 4294901760
  %v1200 = vsub.f32 %v386, %v1199
  %1201 = vmatprep.subr.mxu0 %v1200
  %v1202 = vand.u32 %v385, 4294901760
  %v1203 = vsub.f32 %v385, %v1202
  %1204 = vmatpush1.msra.mxu0 %v1203
  %v1205 = vand.u32 %v390, 4294901760
  %v1206 = vsub.f32 %v390, %v1205
  %1207 = vmatprep.subr.mxu0 %v1206
  %v1208 = vand.u32 %v389, 4294901760
  %v1209 = vsub.f32 %v389, %v1208
  %1210 = vmatpush1.msra.mxu0 %v1209
  %v1211 = vand.u32 %v394, 4294901760
  %v1212 = vsub.f32 %v394, %v1211
  %1213 = vmatprep.subr.mxu0 %v1212
  %v1214 = vand.u32 %v393, 4294901760
  %v1215 = vsub.f32 %v393, %v1214
  %1216 = vmatpush1.msra.mxu0 %v1215
  %v1217 = vand.u32 %v414, 4294901760
  %v1218 = vsub.f32 %v414, %v1217
  %1219 = vmatprep.subr.mxu0 %v1218
  %v1220 = vand.u32 %v411, 4294901760
  %v1221 = vsub.f32 %v411, %v1220
  %1222 = vmatpush1.msra.mxu0 %v1221
  %1223 = vmatprep.subr.mxu0 0.0
  %1224 = vmatpush1.msra.mxu0 0.0
  %1225 = vmatprep.subr.mxu0 0.0
  %1226 = vmatpush1.msra.mxu0 0.0
  %1227 = vmatprep.subr.mxu0 0.0
  %1228 = vmatpush1.msra.mxu0 0.0
  %1229 = vmatprep.subr.mxu0 0.0
  %1230 = vmatpush1.msra.mxu0 0.0
  %1231 = vmatprep.subr.mxu0 0.0
  %1232 = vmatpush1.msra.mxu0 0.0
  %1233 = vmatprep.subr.mxu0 0.0
  %1234 = vmatpush1.msra.mxu0 0.0
  %1235 = vmatprep.subr.mxu0 0.0
  %1236 = vmatpush1.msra.mxu0 0.0
  %1237 = vmatprep.subr.mxu0 0.0
  %1238 = vmatpush1.msra.mxu0 0.0
  %1239 = vmatprep.subr.mxu0 0.0
  %1240 = vmatpush1.msra.mxu0 0.0
  %1241 = vmatprep.subr.mxu0 0.0
  %1242 = vmatpush1.msra.mxu0 0.0
  %1243 = vmatprep.subr.mxu0 0.0
  %1244 = vmatpush1.msra.mxu0 0.0
  %1245 = vmatprep.subr.mxu0 0.0
  %1246 = vmatpush1.msra.mxu0 0.0
  %1247 = vmatprep.subr.mxu0 0.0
  %1248 = vmatpush1.msra.mxu0 0.0
  %1249 = vmatprep.subr.mxu0 0.0
  %1250 = vmatpush1.msra.mxu0 0.0
  %1251 = vmatprep.subr.mxu0 0.0
  %1252 = vmatpush1.msra.mxu0 0.0
  %1253 = vmatprep.subr.mxu0 0.0
  %1254 = vmatpush1.msra.mxu0 0.0
  %1255 = vmatprep.subr.mxu0 0.0
  %1256 = vmatpush1.msra.mxu0 0.0
  %1257 = vmatprep.subr.mxu0 0.0
  %1258 = vmatpush1.msra.mxu0 0.0
  %1259 = vmatprep.subr.mxu0 0.0
  %1260 = vmatpush1.msra.mxu0 0.0
  %1261 = vmatprep.subr.mxu0 0.0
  %1262 = vmatpush1.msra.mxu0 0.0
  %1263 = vmatprep.subr.mxu0 0.0
  %1264 = vmatpush1.msra.mxu0 0.0
  %1265 = vmatprep.subr.mxu0 0.0
  %1266 = vmatpush1.msra.mxu0 0.0
  %1267 = vmatprep.subr.mxu0 0.0
  %1268 = vmatpush1.msra.mxu0 0.0
  %1269 = vmatprep.subr.mxu0 0.0
  %1270 = vmatpush1.msra.mxu0 0.0
  %1271 = vmatprep.subr.mxu0 0.0
  %1272 = vmatpush1.msra.mxu0 0.0
  %1273 = vmatprep.subr.mxu0 0.0
  %1274 = vmatpush1.msra.mxu0 0.0
  %1275 = vmatprep.subr.mxu0 0.0
  %1276 = vmatpush1.msra.mxu0 0.0
  %1277 = vmatprep.mubr.f32.mxu0 0.0
  %v1278 = vand.u32 %v402, 4294901760
  %v1279 = vsub.f32 %v402, %v1278
  %1280 = vmatmul.mubr.f32.gmra.mrb[0].mxu0 %v1279
  %v1281 = vpop.f32.mrb[0].mxu0
  %v1282 = vadd.f32 %v1189, %v1281
  %v1283 = vpop.f32.mrb[0].mxu0
  %v1284 = vadd.f32 %v1191, %v1283
  %1285 = vdwg.mxu0
  %v1286 = vand.u32 %v382, 4294901760
  %1287 = vmatprep.subr.mxu0 %v1286
  %v1288 = vand.u32 %v381, 4294901760
  %1289 = vmatpush1.msra.mxu0 %v1288
  %v1290 = vand.u32 %v386, 4294901760
  %1291 = vmatprep.subr.mxu0 %v1290
  %v1292 = vand.u32 %v385, 4294901760
  %1293 = vmatpush1.msra.mxu0 %v1292
  %v1294 = vand.u32 %v390, 4294901760
  %1295 = vmatprep.subr.mxu0 %v1294
  %v1296 = vand.u32 %v389, 4294901760
  %1297 = vmatpush1.msra.mxu0 %v1296
  %v1298 = vand.u32 %v394, 4294901760
  %1299 = vmatprep.subr.mxu0 %v1298
  %v1300 = vand.u32 %v393, 4294901760
  %1301 = vmatpush1.msra.mxu0 %v1300
  %v1302 = vand.u32 %v414, 4294901760
  %1303 = vmatprep.subr.mxu0 %v1302
  %v1304 = vand.u32 %v411, 4294901760
  %1305 = vmatpush1.msra.mxu0 %v1304
  %1306 = vmatprep.subr.mxu0 0.0
  %1307 = vmatpush1.msra.mxu0 0.0
  %1308 = vmatprep.subr.mxu0 0.0
  %1309 = vmatpush1.msra.mxu0 0.0
  %1310 = vmatprep.subr.mxu0 0.0
  %1311 = vmatpush1.msra.mxu0 0.0
  %1312 = vmatprep.subr.mxu0 0.0
  %1313 = vmatpush1.msra.mxu0 0.0
  %1314 = vmatprep.subr.mxu0 0.0
  %1315 = vmatpush1.msra.mxu0 0.0
  %1316 = vmatprep.subr.mxu0 0.0
  %1317 = vmatpush1.msra.mxu0 0.0
  %1318 = vmatprep.subr.mxu0 0.0
  %1319 = vmatpush1.msra.mxu0 0.0
  %1320 = vmatprep.subr.mxu0 0.0
  %1321 = vmatpush1.msra.mxu0 0.0
  %1322 = vmatprep.subr.mxu0 0.0
  %1323 = vmatpush1.msra.mxu0 0.0
  %1324 = vmatprep.subr.mxu0 0.0
  %1325 = vmatpush1.msra.mxu0 0.0
  %1326 = vmatprep.subr.mxu0 0.0
  %1327 = vmatpush1.msra.mxu0 0.0
  %1328 = vmatprep.subr.mxu0 0.0
  %1329 = vmatpush1.msra.mxu0 0.0
  %1330 = vmatprep.subr.mxu0 0.0
  %1331 = vmatpush1.msra.mxu0 0.0
  %1332 = vmatprep.subr.mxu0 0.0
  %1333 = vmatpush1.msra.mxu0 0.0
  %1334 = vmatprep.subr.mxu0 0.0
  %1335 = vmatpush1.msra.mxu0 0.0
  %1336 = vmatprep.subr.mxu0 0.0
  %1337 = vmatpush1.msra.mxu0 0.0
  %1338 = vmatprep.subr.mxu0 0.0
  %1339 = vmatpush1.msra.mxu0 0.0
  %1340 = vmatprep.subr.mxu0 0.0
  %1341 = vmatpush1.msra.mxu0 0.0
  %1342 = vmatprep.subr.mxu0 0.0
  %1343 = vmatpush1.msra.mxu0 0.0
  %1344 = vmatprep.subr.mxu0 0.0
  %1345 = vmatpush1.msra.mxu0 0.0
  %1346 = vmatprep.subr.mxu0 0.0
  %1347 = vmatpush1.msra.mxu0 0.0
  %1348 = vmatprep.subr.mxu0 0.0
  %1349 = vmatpush1.msra.mxu0 0.0
  %1350 = vmatprep.subr.mxu0 0.0
  %1351 = vmatpush1.msra.mxu0 0.0
  %1352 = vmatprep.subr.mxu0 0.0
  %1353 = vmatpush1.msra.mxu0 0.0
  %1354 = vmatprep.subr.mxu0 0.0
  %1355 = vmatpush1.msra.mxu0 0.0
  %1356 = vmatprep.subr.mxu0 0.0
  %1357 = vmatpush1.msra.mxu0 0.0
  %1358 = vmatprep.subr.mxu0 0.0
  %1359 = vmatpush1.msra.mxu0 0.0
  %1360 = vmatprep.mubr.f32.mxu0 0.0
  %v1361 = vand.u32 %v402, 4294901760
  %v1362 = vsub.f32 %v402, %v1361
  %v1363 = vand.u32 %v1362, 4294901760
  %1364 = vmatmul.mubr.f32.gmra.mrb[0].mxu0 %v1363
  %v1365 = vpop.f32.mrb[0].mxu0
  %v1366 = vadd.f32 %v1282, %v1365
  %v1367 = vpop.f32.mrb[0].mxu0
  %v1368 = vadd.f32 %v1284, %v1367
  %1369 = vdwg.mxu0
  %v1370 = vand.u32 %v382, 4294901760
  %v1371 = vsub.f32 %v382, %v1370
  %v1372 = vand.u32 %v1371, 4294901760
  %1373 = vmatprep.subr.mxu0 %v1372
  %v1374 = vand.u32 %v381, 4294901760
  %v1375 = vsub.f32 %v381, %v1374
  %v1376 = vand.u32 %v1375, 4294901760
  %1377 = vmatpush1.msra.mxu0 %v1376
  %v1378 = vand.u32 %v386, 4294901760
  %v1379 = vsub.f32 %v386, %v1378
  %v1380 = vand.u32 %v1379, 4294901760
  %1381 = vmatprep.subr.mxu0 %v1380
  %v1382 = vand.u32 %v385, 4294901760
  %v1383 = vsub.f32 %v385, %v1382
  %v1384 = vand.u32 %v1383, 4294901760
  %1385 = vmatpush1.msra.mxu0 %v1384
  %v1386 = vand.u32 %v390, 4294901760
  %v1387 = vsub.f32 %v390, %v1386
  %v1388 = vand.u32 %v1387, 4294901760
  %1389 = vmatprep.subr.mxu0 %v1388
  %v1390 = vand.u32 %v389, 4294901760
  %v1391 = vsub.f32 %v389, %v1390
  %v1392 = vand.u32 %v1391, 4294901760
  %1393 = vmatpush1.msra.mxu0 %v1392
  %v1394 = vand.u32 %v394, 4294901760
  %v1395 = vsub.f32 %v394, %v1394
  %v1396 = vand.u32 %v1395, 4294901760
  %1397 = vmatprep.subr.mxu0 %v1396
  %v1398 = vand.u32 %v393, 4294901760
  %v1399 = vsub.f32 %v393, %v1398
  %v1400 = vand.u32 %v1399, 4294901760
  %1401 = vmatpush1.msra.mxu0 %v1400
  %v1402 = vand.u32 %v414, 4294901760
  %v1403 = vsub.f32 %v414, %v1402
  %v1404 = vand.u32 %v1403, 4294901760
  %1405 = vmatprep.subr.mxu0 %v1404
  %v1406 = vand.u32 %v411, 4294901760
  %v1407 = vsub.f32 %v411, %v1406
  %v1408 = vand.u32 %v1407, 4294901760
  %1409 = vmatpush1.msra.mxu0 %v1408
  %1410 = vmatprep.subr.mxu0 0.0
  %1411 = vmatpush1.msra.mxu0 0.0
  %1412 = vmatprep.subr.mxu0 0.0
  %1413 = vmatpush1.msra.mxu0 0.0
  %1414 = vmatprep.subr.mxu0 0.0
  %1415 = vmatpush1.msra.mxu0 0.0
  %1416 = vmatprep.subr.mxu0 0.0
  %1417 = vmatpush1.msra.mxu0 0.0
  %1418 = vmatprep.subr.mxu0 0.0
  %1419 = vmatpush1.msra.mxu0 0.0
  %1420 = vmatprep.subr.mxu0 0.0
  %1421 = vmatpush1.msra.mxu0 0.0
  %1422 = vmatprep.subr.mxu0 0.0
  %1423 = vmatpush1.msra.mxu0 0.0
  %1424 = vmatprep.subr.mxu0 0.0
  %1425 = vmatpush1.msra.mxu0 0.0
  %1426 = vmatprep.subr.mxu0 0.0
  %1427 = vmatpush1.msra.mxu0 0.0
  %1428 = vmatprep.subr.mxu0 0.0
  %1429 = vmatpush1.msra.mxu0 0.0
  %1430 = vmatprep.subr.mxu0 0.0
  %1431 = vmatpush1.msra.mxu0 0.0
  %1432 = vmatprep.subr.mxu0 0.0
  %1433 = vmatpush1.msra.mxu0 0.0
  %1434 = vmatprep.subr.mxu0 0.0
  %1435 = vmatpush1.msra.mxu0 0.0
  %1436 = vmatprep.subr.mxu0 0.0
  %1437 = vmatpush1.msra.mxu0 0.0
  %1438 = vmatprep.subr.mxu0 0.0
  %1439 = vmatpush1.msra.mxu0 0.0
  %1440 = vmatprep.subr.mxu0 0.0
  %1441 = vmatpush1.msra.mxu0 0.0
  %1442 = vmatprep.subr.mxu0 0.0
  %1443 = vmatpush1.msra.mxu0 0.0
  %1444 = vmatprep.subr.mxu0 0.0
  %1445 = vmatpush1.msra.mxu0 0.0
  %1446 = vmatprep.subr.mxu0 0.0
  %1447 = vmatpush1.msra.mxu0 0.0
  %1448 = vmatprep.subr.mxu0 0.0
  %1449 = vmatpush1.msra.mxu0 0.0
  %1450 = vmatprep.subr.mxu0 0.0
  %1451 = vmatpush1.msra.mxu0 0.0
  %1452 = vmatprep.subr.mxu0 0.0
  %1453 = vmatpush1.msra.mxu0 0.0
  %1454 = vmatprep.subr.mxu0 0.0
  %1455 = vmatpush1.msra.mxu0 0.0
  %1456 = vmatprep.subr.mxu0 0.0
  %1457 = vmatpush1.msra.mxu0 0.0
  %1458 = vmatprep.subr.mxu0 0.0
  %1459 = vmatpush1.msra.mxu0 0.0
  %1460 = vmatprep.subr.mxu0 0.0
  %1461 = vmatpush1.msra.mxu0 0.0
  %1462 = vmatprep.subr.mxu0 0.0
  %1463 = vmatpush1.msra.mxu0 0.0
  %1464 = vmatprep.mubr.f32.mxu0 0.0
  %v1465 = vand.u32 %v402, 4294901760
  %1466 = vmatmul.mubr.f32.gmra.mrb[0].mxu0 %v1465
  %v1467 = vpop.f32.mrb[0].mxu0
  %v1468 = vadd.f32 %v1366, %v1467
  %v1469 = vpop.f32.mrb[0].mxu0
  %v1470 = vadd.f32 %v1368, %v1469
  %1471 = vdwg.mxu0
  %v1472 = vand.u32 %v382, 4294901760
  %1473 = vmatprep.subr.mxu0 %v1472
  %v1474 = vand.u32 %v381, 4294901760
  %1475 = vmatpush1.msra.mxu0 %v1474
  %v1476 = vand.u32 %v386, 4294901760
  %1477 = vmatprep.subr.mxu0 %v1476
  %v1478 = vand.u32 %v385, 4294901760
  %1479 = vmatpush1.msra.mxu0 %v1478
  %v1480 = vand.u32 %v390, 4294901760
  %1481 = vmatprep.subr.mxu0 %v1480
  %v1482 = vand.u32 %v389, 4294901760
  %1483 = vmatpush1.msra.mxu0 %v1482
  %v1484 = vand.u32 %v394, 4294901760
  %1485 = vmatprep.subr.mxu0 %v1484
  %v1486 = vand.u32 %v393, 4294901760
  %1487 = vmatpush1.msra.mxu0 %v1486
  %v1488 = vand.u32 %v414, 4294901760
  %1489 = vmatprep.subr.mxu0 %v1488
  %v1490 = vand.u32 %v411, 4294901760
  %1491 = vmatpush1.msra.mxu0 %v1490
  %1492 = vmatprep.subr.mxu0 0.0
  %1493 = vmatpush1.msra.mxu0 0.0
  %1494 = vmatprep.subr.mxu0 0.0
  %1495 = vmatpush1.msra.mxu0 0.0
  %1496 = vmatprep.subr.mxu0 0.0
  %1497 = vmatpush1.msra.mxu0 0.0
  %1498 = vmatprep.subr.mxu0 0.0
  %1499 = vmatpush1.msra.mxu0 0.0
  %1500 = vmatprep.subr.mxu0 0.0
  %1501 = vmatpush1.msra.mxu0 0.0
  %1502 = vmatprep.subr.mxu0 0.0
  %1503 = vmatpush1.msra.mxu0 0.0
  %1504 = vmatprep.subr.mxu0 0.0
  %1505 = vmatpush1.msra.mxu0 0.0
  %1506 = vmatprep.subr.mxu0 0.0
  %1507 = vmatpush1.msra.mxu0 0.0
  %1508 = vmatprep.subr.mxu0 0.0
  %1509 = vmatpush1.msra.mxu0 0.0
  %1510 = vmatprep.subr.mxu0 0.0
  %1511 = vmatpush1.msra.mxu0 0.0
  %1512 = vmatprep.subr.mxu0 0.0
  %1513 = vmatpush1.msra.mxu0 0.0
  %1514 = vmatprep.subr.mxu0 0.0
  %1515 = vmatpush1.msra.mxu0 0.0
  %1516 = vmatprep.subr.mxu0 0.0
  %1517 = vmatpush1.msra.mxu0 0.0
  %1518 = vmatprep.subr.mxu0 0.0
  %1519 = vmatpush1.msra.mxu0 0.0
  %1520 = vmatprep.subr.mxu0 0.0
  %1521 = vmatpush1.msra.mxu0 0.0
  %1522 = vmatprep.subr.mxu0 0.0
  %1523 = vmatpush1.msra.mxu0 0.0
  %1524 = vmatprep.subr.mxu0 0.0
  %1525 = vmatpush1.msra.mxu0 0.0
  %1526 = vmatprep.subr.mxu0 0.0
  %1527 = vmatpush1.msra.mxu0 0.0
  %1528 = vmatprep.subr.mxu0 0.0
  %1529 = vmatpush1.msra.mxu0 0.0
  %1530 = vmatprep.subr.mxu0 0.0
  %1531 = vmatpush1.msra.mxu0 0.0
  %1532 = vmatprep.subr.mxu0 0.0
  %1533 = vmatpush1.msra.mxu0 0.0
  %1534 = vmatprep.subr.mxu0 0.0
  %1535 = vmatpush1.msra.mxu0 0.0
  %1536 = vmatprep.subr.mxu0 0.0
  %1537 = vmatpush1.msra.mxu0 0.0
  %1538 = vmatprep.subr.mxu0 0.0
  %1539 = vmatpush1.msra.mxu0 0.0
  %1540 = vmatprep.subr.mxu0 0.0
  %1541 = vmatpush1.msra.mxu0 0.0
  %1542 = vmatprep.subr.mxu0 0.0
  %1543 = vmatpush1.msra.mxu0 0.0
  %1544 = vmatprep.subr.mxu0 0.0
  %1545 = vmatpush1.msra.mxu0 0.0
  %1546 = vmatprep.mubr.f32.mxu0 0.0
  %v1547 = vand.u32 %v402, 4294901760
  %1548 = vmatmul.mubr.f32.gmra.mrb[0].mxu0 %v1547
  %v1549 = vpop.f32.mrb[0].mxu0
  %v1550 = vadd.f32 %v1468, %v1549
  %v1551 = vpop.f32.mrb[0].mxu0
  %v1552 = vadd.f32 %v1470, %v1551
  %1553 = vdwg.mxu0
  %v1554 = vsel %vm378, %v981, 0.0
  %v1555 = vsel %vm378, %v983, 0.0
  %v1556 = vadd.f32 %v1554, %v1555
  %v1557 = vsel %vm378, %v1550, 0.0
  %v1558 = vadd.f32 %v1556, %v1557
  %v1559 = vsel %vm378, %v1552, 0.0
  %v1560 = vadd.f32 %v1558, %v1559
  %1561 = vadd.xlane.f32.xlu0 %v1560
  %v1562 = vpop.xlane.xlu0 %1561
  %v1563 = vmul.f32 %v1562, 0.001953125
  %v1564 = vsub.f32 %v981, %v1563
  %v1565 = vsub.f32 %v983, %v1563
  %v1566 = vsub.f32 %v1550, %v1563
  %v1567 = vsub.f32 %v1552, %v1563
  %v1568 = vmul.f32 %v1564, %v1564
  %v1569 = vmul.f32 %v1565, %v1565
  %v1570 = vmul.f32 %v1566, %v1566
  %v1571 = vmul.f32 %v1567, %v1567
  %v1572 = vsel %vm378, %v1568, 0.0
  %v1573 = vsel %vm378, %v1569, 0.0
  %v1574 = vadd.f32 %v1572, %v1573
  %v1575 = vsel %vm378, %v1570, 0.0
  %v1576 = vadd.f32 %v1574, %v1575
  %v1577 = vsel %vm378, %v1571, 0.0
  %v1578 = vadd.f32 %v1576, %v1577
  %1579 = vadd.xlane.f32.xlu0 %v1578
  %v1580 = vpop.xlane.xlu0 %1579
  %v1581 = vmul.f32 %v1580, 0.001953125
  %v1582 = vadd.f32 %v1581, 1e-05
  %v1583 = vrsqrt.pop %v1582
  %v1584 = vmul.f32 %v1583, %v53
  %1586 = vset.pattern.permute.xlu0 0
  %1587 = vperm.xlu0 %1586, %v1584
  %v1588 = vpop.permute.xlu0 %1587
  %v1590 = vmul.f32 %v1564, %v1588
  %v1591 = vmul.f32 %v1565, %v1588
  %v1592 = vmul.f32 %v1566, %v1588
  %v1593 = vmul.f32 %v1567, %v1588
  %1595 = vset.pattern.permute.xlu0 0
  %1596 = vperm.xlu0 %1595, %v55
  %v1597 = vpop.permute.xlu0 %1596
  %v1599 = vadd.f32 %v1590, %v1597
  %v1600 = vadd.f32 %v1591, %v1597
  %v1601 = vadd.f32 %v1592, %v1597
  %v1602 = vadd.f32 %v1593, %v1597
  %vm1603 = vcmp.gt.f32.partialorder %v1599, 0.0
  %vm1604 = vcmp.gt.f32.partialorder %v1600, 0.0
  %vm1605 = vcmp.gt.f32.partialorder %v1601, 0.0
  %vm1606 = vcmp.gt.f32.partialorder %v1602, 0.0
  %v1607 = vstv %s57
  %v1608 = vmul.f32 %v1607, %v1599
  %v1609 = vmul.f32 %v1607, %v1600
  %v1610 = vmul.f32 %v1607, %v1601
  %v1611 = vmul.f32 %v1607, %v1602
  %v1612 = vsel %vm1603, %v1599, %v1608
  %v1613 = vsel %vm1604, %v1600, %v1609
  %v1614 = vsel %vm1605, %v1601, %v1610
  %v1615 = vsel %vm1606, %v1602, %v1611
  %1616 = vrot.lane.b32.xlu0 %v1612, 17
  %v1617 = vpop.permute.xlu0 %1616
  %1618 = vrot.lane.b32.xlu0 %v1613, 17
  %v1619 = vpop.permute.xlu0 %1618
  %1620 = vrot.lane.b32.xlu0 %v1614, 17
  %v1621 = vpop.permute.xlu0 %1620
  %1622 = vrot.lane.b32.xlu0 %v1615, 17
  %v1623 = vpop.permute.xlu0 %1622
  %v1624 = vsel %vm74, %v1621, %v1623
  %v1625 = vsel %vm74, %v1619, %v1621
  %v1626 = vsel %vm74, %v1617, %v1619
  %v1627 = vsel %vm74, %v1623, %v1617
  %v1628 = vmul.f32 %v1627, %v82
  %v1629 = vmul.f32 %v1626, %v86
  %v1630 = vmul.f32 %v1625, %v90
  %v1631 = vmul.f32 %v1624, %v94
  %1632 = vrot.lane.b32.xlu0 %v1612, 16
  %v1633 = vpop.permute.xlu0 %1632
  %1634 = vrot.lane.b32.xlu0 %v1613, 16
  %v1635 = vpop.permute.xlu0 %1634
  %1636 = vrot.lane.b32.xlu0 %v1614, 16
  %v1637 = vpop.permute.xlu0 %1636
  %1638 = vrot.lane.b32.xlu0 %v1615, 16
  %v1639 = vpop.permute.xlu0 %1638
  %v1640 = vsel %vm107, %v1637, %v1639
  %v1641 = vsel %vm107, %v1635, %v1637
  %v1642 = vsel %vm107, %v1633, %v1635
  %v1643 = vsel %vm107, %v1639, %v1633
  %v1644 = vmul.f32 %v1643, %v115
  %v1645 = vmul.f32 %v1642, %v119
  %v1646 = vmul.f32 %v1641, %v123
  %v1647 = vmul.f32 %v1640, %v127
  %1648 = vrot.lane.b32.xlu0 %v1612, 15
  %v1649 = vpop.permute.xlu0 %1648
  %1650 = vrot.lane.b32.xlu0 %v1613, 15
  %v1651 = vpop.permute.xlu0 %1650
  %1652 = vrot.lane.b32.xlu0 %v1614, 15
  %v1653 = vpop.permute.xlu0 %1652
  %1654 = vrot.lane.b32.xlu0 %v1615, 15
  %v1655 = vpop.permute.xlu0 %1654
  %v1656 = vsel %vm140, %v1653, %v1655
  %v1657 = vsel %vm140, %v1651, %v1653
  %v1658 = vsel %vm140, %v1649, %v1651
  %v1659 = vsel %vm140, %v1655, %v1649
  %v1660 = vmul.f32 %v1659, %v148
  %v1661 = vmul.f32 %v1658, %v152
  %v1662 = vmul.f32 %v1657, %v156
  %v1663 = vmul.f32 %v1656, %v160
  %1664 = vrot.lane.b32.xlu0 %v1612, 1
  %v1665 = vpop.permute.xlu0 %1664
  %1666 = vrot.lane.b32.xlu0 %v1613, 1
  %v1667 = vpop.permute.xlu0 %1666
  %1668 = vrot.lane.b32.xlu0 %v1614, 1
  %v1669 = vpop.permute.xlu0 %1668
  %1670 = vrot.lane.b32.xlu0 %v1615, 1
  %v1671 = vpop.permute.xlu0 %1670
  %v1672 = vsel %vm173, %v1669, %v1671
  %v1673 = vsel %vm173, %v1667, %v1669
  %v1674 = vsel %vm173, %v1665, %v1667
  %v1675 = vsel %vm173, %v1671, %v1665
  %v1676 = vmul.f32 %v1675, %v181
  %v1677 = vmul.f32 %v1674, %v185
  %v1678 = vmul.f32 %v1673, %v189
  %v1679 = vmul.f32 %v1672, %v193
  %1680 = vrot.lane.b32.xlu0 %v1612, 127
  %v1681 = vpop.permute.xlu0 %1680
  %1682 = vrot.lane.b32.xlu0 %v1613, 127
  %v1683 = vpop.permute.xlu0 %1682
  %1684 = vrot.lane.b32.xlu0 %v1614, 127
  %v1685 = vpop.permute.xlu0 %1684
  %1686 = vrot.lane.b32.xlu0 %v1615, 127
  %v1687 = vpop.permute.xlu0 %1686
  %v1688 = vsel %vm206, %v1685, %v1687
  %v1689 = vsel %vm206, %v1683, %v1685
  %v1690 = vsel %vm206, %v1681, %v1683
  %v1691 = vsel %vm206, %v1687, %v1681
  %v1692 = vmul.f32 %v1690, %v214
  %v1693 = vmul.f32 %v1689, %v218
  %v1694 = vmul.f32 %v1688, %v222
  %v1695 = vmul.f32 %v1691, %v226
  %1696 = vrot.lane.b32.xlu0 %v1612, 113
  %v1697 = vpop.permute.xlu0 %1696
  %1698 = vrot.lane.b32.xlu0 %v1613, 113
  %v1699 = vpop.permute.xlu0 %1698
  %1700 = vrot.lane.b32.xlu0 %v1614, 113
  %v1701 = vpop.permute.xlu0 %1700
  %1702 = vrot.lane.b32.xlu0 %v1615, 113
  %v1703 = vpop.permute.xlu0 %1702
  %v1704 = vsel %vm239, %v1701, %v1703
  %v1705 = vsel %vm239, %v1699, %v1701
  %v1706 = vsel %vm239, %v1697, %v1699
  %v1707 = vsel %vm239, %v1703, %v1697
  %v1708 = vmul.f32 %v1706, %v247
  %v1709 = vmul.f32 %v1705, %v251
  %v1710 = vmul.f32 %v1704, %v255
  %v1711 = vmul.f32 %v1707, %v259
  %1712 = vrot.lane.b32.xlu0 %v1612, 112
  %v1713 = vpop.permute.xlu0 %1712
  %1714 = vrot.lane.b32.xlu0 %v1613, 112
  %v1715 = vpop.permute.xlu0 %1714
  %1716 = vrot.lane.b32.xlu0 %v1614, 112
  %v1717 = vpop.permute.xlu0 %1716
  %1718 = vrot.lane.b32.xlu0 %v1615, 112
  %v1719 = vpop.permute.xlu0 %1718
  %v1720 = vsel %vm272, %v1717, %v1719
  %v1721 = vsel %vm272, %v1715, %v1717
  %v1722 = vsel %vm272, %v1713, %v1715
  %v1723 = vsel %vm272, %v1719, %v1713
  %v1724 = vmul.f32 %v1722, %v280
  %v1725 = vmul.f32 %v1721, %v284
  %v1726 = vmul.f32 %v1720, %v288
  %v1727 = vmul.f32 %v1723, %v292
  %1728 = vrot.lane.b32.xlu0 %v1612, 111
  %v1729 = vpop.permute.xlu0 %1728
  %1730 = vrot.lane.b32.xlu0 %v1613, 111
  %v1731 = vpop.permute.xlu0 %1730
  %1732 = vrot.lane.b32.xlu0 %v1614, 111
  %v1733 = vpop.permute.xlu0 %1732
  %1734 = vrot.lane.b32.xlu0 %v1615, 111
  %v1735 = vpop.permute.xlu0 %1734
  %v1736 = vsel %vm305, %v1733, %v1735
  %v1737 = vsel %vm305, %v1731, %v1733
  %v1738 = vsel %vm305, %v1729, %v1731
  %v1739 = vsel %vm305, %v1735, %v1729
  %v1740 = vmul.f32 %v1738, %v313
  %v1741 = vmul.f32 %v1737, %v317
  %v1742 = vmul.f32 %v1736, %v321
  %v1743 = vmul.f32 %v1739, %v325
  %v1748 = vrot.slane %v1644, 4
  %v1749 = vrot.slane %v1645, 4
  %v1750 = vrot.slane %v1646, 4
  %v1751 = vrot.slane %v1647, 4
  %v1760 = vrot.slane %v1676, 4
  %v1761 = vrot.slane %v1677, 4
  %v1762 = vrot.slane %v1678, 4
  %v1763 = vrot.slane %v1679, 4
  %v1772 = vrot.slane %v1692, 4
  %v1773 = vrot.slane %v1693, 4
  %v1774 = vrot.slane %v1694, 4
  %v1775 = vrot.slane %v1695, 4
  %v1784 = vrot.slane %v1724, 4
  %v1785 = vrot.slane %v1725, 4
  %v1786 = vrot.slane %v1726, 4
  %v1787 = vrot.slane %v1727, 4
  %v1792 = vsel %vm378, %v1628, %v1748
  %v1793 = vsel %vm378, %v1629, %v1749
  %v1794 = vsel %vm378, %v1630, %v1750
  %v1795 = vsel %vm378, %v1631, %v1751
  %v1796 = vsel %vm378, %v1660, %v1760
  %v1797 = vsel %vm378, %v1661, %v1761
  %v1798 = vsel %vm378, %v1662, %v1762
  %v1799 = vsel %vm378, %v1663, %v1763
  %v1800 = vsel %vm378, %v1612, %v1772
  %v1801 = vsel %vm378, %v1613, %v1773
  %v1802 = vsel %vm378, %v1614, %v1774
  %v1803 = vsel %vm378, %v1615, %v1775
  %v1804 = vsel %vm378, %v1708, %v1784
  %v1805 = vsel %vm378, %v1709, %v1785
  %v1806 = vsel %vm378, %v1710, %v1786
  %v1807 = vsel %vm378, %v1711, %v1787
  %1809 = vset.pattern.permute.xlu0 0
  %1810 = vperm.xlu0 %1809, %v52
  %v1811 = vpop.permute.xlu0 %1810
  %v1814 = vsel %vm400, %v50, 0
  %v1817 = vsel %vm378, %v1740, 0
  %v1820 = vsel %vm378, %v1741, 0
  %v1823 = vsel %vm378, %v1742, 0
  %v1826 = vsel %vm378, %v1743, 0
  %v1828 = vand.u32 %v1793, 4294901760
  %1829 = vmatprep.subr.mxu0 %v1828
  %v1830 = vand.u32 %v1792, 4294901760
  %1831 = vmatpush1.msra.mxu0 %v1830
  %v1832 = vand.u32 %v1797, 4294901760
  %1833 = vmatprep.subr.mxu0 %v1832
  %v1834 = vand.u32 %v1796, 4294901760
  %1835 = vmatpush1.msra.mxu0 %v1834
  %v1836 = vand.u32 %v1801, 4294901760
  %1837 = vmatprep.subr.mxu0 %v1836
  %v1838 = vand.u32 %v1800, 4294901760
  %1839 = vmatpush1.msra.mxu0 %v1838
  %v1840 = vand.u32 %v1805, 4294901760
  %1841 = vmatprep.subr.mxu0 %v1840
  %v1842 = vand.u32 %v1804, 4294901760
  %1843 = vmatpush1.msra.mxu0 %v1842
  %v1844 = vand.u32 %v1820, 4294901760
  %1845 = vmatprep.subr.mxu0 %v1844
  %v1846 = vand.u32 %v1817, 4294901760
  %1847 = vmatpush1.msra.mxu0 %v1846
  %1848 = vmatprep.subr.mxu0 0.0
  %1849 = vmatpush1.msra.mxu0 0.0
  %1850 = vmatprep.subr.mxu0 0.0
  %1851 = vmatpush1.msra.mxu0 0.0
  %1852 = vmatprep.subr.mxu0 0.0
  %1853 = vmatpush1.msra.mxu0 0.0
  %1854 = vmatprep.subr.mxu0 0.0
  %1855 = vmatpush1.msra.mxu0 0.0
  %1856 = vmatprep.subr.mxu0 0.0
  %1857 = vmatpush1.msra.mxu0 0.0
  %1858 = vmatprep.subr.mxu0 0.0
  %1859 = vmatpush1.msra.mxu0 0.0
  %1860 = vmatprep.subr.mxu0 0.0
  %1861 = vmatpush1.msra.mxu0 0.0
  %1862 = vmatprep.subr.mxu0 0.0
  %1863 = vmatpush1.msra.mxu0 0.0
  %1864 = vmatprep.subr.mxu0 0.0
  %1865 = vmatpush1.msra.mxu0 0.0
  %1866 = vmatprep.subr.mxu0 0.0
  %1867 = vmatpush1.msra.mxu0 0.0
  %1868 = vmatprep.subr.mxu0 0.0
  %1869 = vmatpush1.msra.mxu0 0.0
  %1870 = vmatprep.subr.mxu0 0.0
  %1871 = vmatpush1.msra.mxu0 0.0
  %1872 = vmatprep.subr.mxu0 0.0
  %1873 = vmatpush1.msra.mxu0 0.0
  %1874 = vmatprep.subr.mxu0 0.0
  %1875 = vmatpush1.msra.mxu0 0.0
  %1876 = vmatprep.subr.mxu0 0.0
  %1877 = vmatpush1.msra.mxu0 0.0
  %1878 = vmatprep.subr.mxu0 0.0
  %1879 = vmatpush1.msra.mxu0 0.0
  %1880 = vmatprep.subr.mxu0 0.0
  %1881 = vmatpush1.msra.mxu0 0.0
  %1882 = vmatprep.subr.mxu0 0.0
  %1883 = vmatpush1.msra.mxu0 0.0
  %1884 = vmatprep.subr.mxu0 0.0
  %1885 = vmatpush1.msra.mxu0 0.0
  %1886 = vmatprep.subr.mxu0 0.0
  %1887 = vmatpush1.msra.mxu0 0.0
  %1888 = vmatprep.subr.mxu0 0.0
  %1889 = vmatpush1.msra.mxu0 0.0
  %1890 = vmatprep.subr.mxu0 0.0
  %1891 = vmatpush1.msra.mxu0 0.0
  %1892 = vmatprep.subr.mxu0 0.0
  %1893 = vmatpush1.msra.mxu0 0.0
  %1894 = vmatprep.subr.mxu0 0.0
  %1895 = vmatpush1.msra.mxu0 0.0
  %1896 = vmatprep.subr.mxu0 0.0
  %1897 = vmatpush1.msra.mxu0 0.0
  %1898 = vmatprep.subr.mxu0 0.0
  %1899 = vmatpush1.msra.mxu0 0.0
  %1900 = vmatprep.subr.mxu0 0.0
  %1901 = vmatpush1.msra.mxu0 0.0
  %1902 = vmatprep.mubr.f32.mxu0 0.0
  %v1903 = vand.u32 %v1814, 4294901760
  %v1904 = vsub.f32 %v1814, %v1903
  %v1905 = vand.u32 %v1904, 4294901760
  %v1906 = vsub.f32 %v1904, %v1905
  %v1907 = vand.u32 %v1906, 4294901760
  %1908 = vmatmul.mubr.f32.gmra.mrb[0].mxu0 %v1907
  %v1909 = vpop.f32.mrb[0].mxu0
  %v1910 = vadd.f32 %v1811, %v1909
  %v1911 = vpop.f32.mrb[0].mxu0
  %v1912 = vadd.f32 %v1811, %v1911
  %1913 = vdwg.mxu0
  %v1914 = vand.u32 %v1793, 4294901760
  %v1915 = vsub.f32 %v1793, %v1914
  %v1916 = vand.u32 %v1915, 4294901760
  %v1917 = vsub.f32 %v1915, %v1916
  %v1918 = vand.u32 %v1917, 4294901760
  %1919 = vmatprep.subr.mxu0 %v1918
  %v1920 = vand.u32 %v1792, 4294901760
  %v1921 = vsub.f32 %v1792, %v1920
  %v1922 = vand.u32 %v1921, 4294901760
  %v1923 = vsub.f32 %v1921, %v1922
  %v1924 = vand.u32 %v1923, 4294901760
  %1925 = vmatpush1.msra.mxu0 %v1924
  %v1926 = vand.u32 %v1797, 4294901760
  %v1927 = vsub.f32 %v1797, %v1926
  %v1928 = vand.u32 %v1927, 4294901760
  %v1929 = vsub.f32 %v1927, %v1928
  %v1930 = vand.u32 %v1929, 4294901760
  %1931 = vmatprep.subr.mxu0 %v1930
  %v1932 = vand.u32 %v1796, 4294901760
  %v1933 = vsub.f32 %v1796, %v1932
  %v1934 = vand.u32 %v1933, 4294901760
  %v1935 = vsub.f32 %v1933, %v1934
  %v1936 = vand.u32 %v1935, 4294901760
  %1937 = vmatpush1.msra.mxu0 %v1936
  %v1938 = vand.u32 %v1801, 4294901760
  %v1939 = vsub.f32 %v1801, %v1938
  %v1940 = vand.u32 %v1939, 4294901760
  %v1941 = vsub.f32 %v1939, %v1940
  %v1942 = vand.u32 %v1941, 4294901760
  %1943 = vmatprep.subr.mxu0 %v1942
  %v1944 = vand.u32 %v1800, 4294901760
  %v1945 = vsub.f32 %v1800, %v1944
  %v1946 = vand.u32 %v1945, 4294901760
  %v1947 = vsub.f32 %v1945, %v1946
  %v1948 = vand.u32 %v1947, 4294901760
  %1949 = vmatpush1.msra.mxu0 %v1948
  %v1950 = vand.u32 %v1805, 4294901760
  %v1951 = vsub.f32 %v1805, %v1950
  %v1952 = vand.u32 %v1951, 4294901760
  %v1953 = vsub.f32 %v1951, %v1952
  %v1954 = vand.u32 %v1953, 4294901760
  %1955 = vmatprep.subr.mxu0 %v1954
  %v1956 = vand.u32 %v1804, 4294901760
  %v1957 = vsub.f32 %v1804, %v1956
  %v1958 = vand.u32 %v1957, 4294901760
  %v1959 = vsub.f32 %v1957, %v1958
  %v1960 = vand.u32 %v1959, 4294901760
  %1961 = vmatpush1.msra.mxu0 %v1960
  %v1962 = vand.u32 %v1820, 4294901760
  %v1963 = vsub.f32 %v1820, %v1962
  %v1964 = vand.u32 %v1963, 4294901760
  %v1965 = vsub.f32 %v1963, %v1964
  %v1966 = vand.u32 %v1965, 4294901760
  %1967 = vmatprep.subr.mxu0 %v1966
  %v1968 = vand.u32 %v1817, 4294901760
  %v1969 = vsub.f32 %v1817, %v1968
  %v1970 = vand.u32 %v1969, 4294901760
  %v1971 = vsub.f32 %v1969, %v1970
  %v1972 = vand.u32 %v1971, 4294901760
  %1973 = vmatpush1.msra.mxu0 %v1972
  %1974 = vmatprep.subr.mxu0 0.0
  %1975 = vmatpush1.msra.mxu0 0.0
  %1976 = vmatprep.subr.mxu0 0.0
  %1977 = vmatpush1.msra.mxu0 0.0
  %1978 = vmatprep.subr.mxu0 0.0
  %1979 = vmatpush1.msra.mxu0 0.0
  %1980 = vmatprep.subr.mxu0 0.0
  %1981 = vmatpush1.msra.mxu0 0.0
  %1982 = vmatprep.subr.mxu0 0.0
  %1983 = vmatpush1.msra.mxu0 0.0
  %1984 = vmatprep.subr.mxu0 0.0
  %1985 = vmatpush1.msra.mxu0 0.0
  %1986 = vmatprep.subr.mxu0 0.0
  %1987 = vmatpush1.msra.mxu0 0.0
  %1988 = vmatprep.subr.mxu0 0.0
  %1989 = vmatpush1.msra.mxu0 0.0
  %1990 = vmatprep.subr.mxu0 0.0
  %1991 = vmatpush1.msra.mxu0 0.0
  %1992 = vmatprep.subr.mxu0 0.0
  %1993 = vmatpush1.msra.mxu0 0.0
  %1994 = vmatprep.subr.mxu0 0.0
  %1995 = vmatpush1.msra.mxu0 0.0
  %1996 = vmatprep.subr.mxu0 0.0
  %1997 = vmatpush1.msra.mxu0 0.0
  %1998 = vmatprep.subr.mxu0 0.0
  %1999 = vmatpush1.msra.mxu0 0.0
  %2000 = vmatprep.subr.mxu0 0.0
  %2001 = vmatpush1.msra.mxu0 0.0
  %2002 = vmatprep.subr.mxu0 0.0
  %2003 = vmatpush1.msra.mxu0 0.0
  %2004 = vmatprep.subr.mxu0 0.0
  %2005 = vmatpush1.msra.mxu0 0.0
  %2006 = vmatprep.subr.mxu0 0.0
  %2007 = vmatpush1.msra.mxu0 0.0
  %2008 = vmatprep.subr.mxu0 0.0
  %2009 = vmatpush1.msra.mxu0 0.0
  %2010 = vmatprep.subr.mxu0 0.0
  %2011 = vmatpush1.msra.mxu0 0.0
  %2012 = vmatprep.subr.mxu0 0.0
  %2013 = vmatpush1.msra.mxu0 0.0
  %2014 = vmatprep.subr.mxu0 0.0
  %2015 = vmatpush1.msra.mxu0 0.0
  %2016 = vmatprep.subr.mxu0 0.0
  %2017 = vmatpush1.msra.mxu0 0.0
  %2018 = vmatprep.subr.mxu0 0.0
  %2019 = vmatpush1.msra.mxu0 0.0
  %2020 = vmatprep.subr.mxu0 0.0
  %2021 = vmatpush1.msra.mxu0 0.0
  %2022 = vmatprep.subr.mxu0 0.0
  %2023 = vmatpush1.msra.mxu0 0.0
  %2024 = vmatprep.subr.mxu0 0.0
  %2025 = vmatpush1.msra.mxu0 0.0
  %2026 = vmatprep.subr.mxu0 0.0
  %2027 = vmatpush1.msra.mxu0 0.0
  %2028 = vmatprep.mubr.f32.mxu0 0.0
  %v2029 = vand.u32 %v1814, 4294901760
  %2030 = vmatmul.mubr.f32.gmra.mrb[0].mxu0 %v2029
  %v2031 = vpop.f32.mrb[0].mxu0
  %v2032 = vadd.f32 %v1910, %v2031
  %v2033 = vpop.f32.mrb[0].mxu0
  %v2034 = vadd.f32 %v1912, %v2033
  %2035 = vdwg.mxu0
  %v2036 = vand.u32 %v1793, 4294901760
  %v2037 = vsub.f32 %v1793, %v2036
  %2038 = vmatprep.subr.mxu0 %v2037
  %v2039 = vand.u32 %v1792, 4294901760
  %v2040 = vsub.f32 %v1792, %v2039
  %2041 = vmatpush1.msra.mxu0 %v2040
  %v2042 = vand.u32 %v1797, 4294901760
  %v2043 = vsub.f32 %v1797, %v2042
  %2044 = vmatprep.subr.mxu0 %v2043
  %v2045 = vand.u32 %v1796, 4294901760
  %v2046 = vsub.f32 %v1796, %v2045
  %2047 = vmatpush1.msra.mxu0 %v2046
  %v2048 = vand.u32 %v1801, 4294901760
  %v2049 = vsub.f32 %v1801, %v2048
  %2050 = vmatprep.subr.mxu0 %v2049
  %v2051 = vand.u32 %v1800, 4294901760
  %v2052 = vsub.f32 %v1800, %v2051
  %2053 = vmatpush1.msra.mxu0 %v2052
  %v2054 = vand.u32 %v1805, 4294901760
  %v2055 = vsub.f32 %v1805, %v2054
  %2056 = vmatprep.subr.mxu0 %v2055
  %v2057 = vand.u32 %v1804, 4294901760
  %v2058 = vsub.f32 %v1804, %v2057
  %2059 = vmatpush1.msra.mxu0 %v2058
  %v2060 = vand.u32 %v1820, 4294901760
  %v2061 = vsub.f32 %v1820, %v2060
  %2062 = vmatprep.subr.mxu0 %v2061
  %v2063 = vand.u32 %v1817, 4294901760
  %v2064 = vsub.f32 %v1817, %v2063
  %2065 = vmatpush1.msra.mxu0 %v2064
  %2066 = vmatprep.subr.mxu0 0.0
  %2067 = vmatpush1.msra.mxu0 0.0
  %2068 = vmatprep.subr.mxu0 0.0
  %2069 = vmatpush1.msra.mxu0 0.0
  %2070 = vmatprep.subr.mxu0 0.0
  %2071 = vmatpush1.msra.mxu0 0.0
  %2072 = vmatprep.subr.mxu0 0.0
  %2073 = vmatpush1.msra.mxu0 0.0
  %2074 = vmatprep.subr.mxu0 0.0
  %2075 = vmatpush1.msra.mxu0 0.0
  %2076 = vmatprep.subr.mxu0 0.0
  %2077 = vmatpush1.msra.mxu0 0.0
  %2078 = vmatprep.subr.mxu0 0.0
  %2079 = vmatpush1.msra.mxu0 0.0
  %2080 = vmatprep.subr.mxu0 0.0
  %2081 = vmatpush1.msra.mxu0 0.0
  %2082 = vmatprep.subr.mxu0 0.0
  %2083 = vmatpush1.msra.mxu0 0.0
  %2084 = vmatprep.subr.mxu0 0.0
  %2085 = vmatpush1.msra.mxu0 0.0
  %2086 = vmatprep.subr.mxu0 0.0
  %2087 = vmatpush1.msra.mxu0 0.0
  %2088 = vmatprep.subr.mxu0 0.0
  %2089 = vmatpush1.msra.mxu0 0.0
  %2090 = vmatprep.subr.mxu0 0.0
  %2091 = vmatpush1.msra.mxu0 0.0
  %2092 = vmatprep.subr.mxu0 0.0
  %2093 = vmatpush1.msra.mxu0 0.0
  %2094 = vmatprep.subr.mxu0 0.0
  %2095 = vmatpush1.msra.mxu0 0.0
  %2096 = vmatprep.subr.mxu0 0.0
  %2097 = vmatpush1.msra.mxu0 0.0
  %2098 = vmatprep.subr.mxu0 0.0
  %2099 = vmatpush1.msra.mxu0 0.0
  %2100 = vmatprep.subr.mxu0 0.0
  %2101 = vmatpush1.msra.mxu0 0.0
  %2102 = vmatprep.subr.mxu0 0.0
  %2103 = vmatpush1.msra.mxu0 0.0
  %2104 = vmatprep.subr.mxu0 0.0
  %2105 = vmatpush1.msra.mxu0 0.0
  %2106 = vmatprep.subr.mxu0 0.0
  %2107 = vmatpush1.msra.mxu0 0.0
  %2108 = vmatprep.subr.mxu0 0.0
  %2109 = vmatpush1.msra.mxu0 0.0
  %2110 = vmatprep.subr.mxu0 0.0
  %2111 = vmatpush1.msra.mxu0 0.0
  %2112 = vmatprep.subr.mxu0 0.0
  %2113 = vmatpush1.msra.mxu0 0.0
  %2114 = vmatprep.subr.mxu0 0.0
  %2115 = vmatpush1.msra.mxu0 0.0
  %2116 = vmatprep.subr.mxu0 0.0
  %2117 = vmatpush1.msra.mxu0 0.0
  %2118 = vmatprep.subr.mxu0 0.0
  %2119 = vmatpush1.msra.mxu0 0.0
  %2120 = vmatprep.mubr.f32.mxu0 0.0
  %v2121 = vand.u32 %v1814, 4294901760
  %v2122 = vsub.f32 %v1814, %v2121
  %2123 = vmatmul.mubr.f32.gmra.mrb[0].mxu0 %v2122
  %v2124 = vpop.f32.mrb[0].mxu0
  %v2125 = vadd.f32 %v2032, %v2124
  %v2126 = vpop.f32.mrb[0].mxu0
  %v2127 = vadd.f32 %v2034, %v2126
  %2128 = vdwg.mxu0
  %v2129 = vand.u32 %v1793, 4294901760
  %2130 = vmatprep.subr.mxu0 %v2129
  %v2131 = vand.u32 %v1792, 4294901760
  %2132 = vmatpush1.msra.mxu0 %v2131
  %v2133 = vand.u32 %v1797, 4294901760
  %2134 = vmatprep.subr.mxu0 %v2133
  %v2135 = vand.u32 %v1796, 4294901760
  %2136 = vmatpush1.msra.mxu0 %v2135
  %v2137 = vand.u32 %v1801, 4294901760
  %2138 = vmatprep.subr.mxu0 %v2137
  %v2139 = vand.u32 %v1800, 4294901760
  %2140 = vmatpush1.msra.mxu0 %v2139
  %v2141 = vand.u32 %v1805, 4294901760
  %2142 = vmatprep.subr.mxu0 %v2141
  %v2143 = vand.u32 %v1804, 4294901760
  %2144 = vmatpush1.msra.mxu0 %v2143
  %v2145 = vand.u32 %v1820, 4294901760
  %2146 = vmatprep.subr.mxu0 %v2145
  %v2147 = vand.u32 %v1817, 4294901760
  %2148 = vmatpush1.msra.mxu0 %v2147
  %2149 = vmatprep.subr.mxu0 0.0
  %2150 = vmatpush1.msra.mxu0 0.0
  %2151 = vmatprep.subr.mxu0 0.0
  %2152 = vmatpush1.msra.mxu0 0.0
  %2153 = vmatprep.subr.mxu0 0.0
  %2154 = vmatpush1.msra.mxu0 0.0
  %2155 = vmatprep.subr.mxu0 0.0
  %2156 = vmatpush1.msra.mxu0 0.0
  %2157 = vmatprep.subr.mxu0 0.0
  %2158 = vmatpush1.msra.mxu0 0.0
  %2159 = vmatprep.subr.mxu0 0.0
  %2160 = vmatpush1.msra.mxu0 0.0
  %2161 = vmatprep.subr.mxu0 0.0
  %2162 = vmatpush1.msra.mxu0 0.0
  %2163 = vmatprep.subr.mxu0 0.0
  %2164 = vmatpush1.msra.mxu0 0.0
  %2165 = vmatprep.subr.mxu0 0.0
  %2166 = vmatpush1.msra.mxu0 0.0
  %2167 = vmatprep.subr.mxu0 0.0
  %2168 = vmatpush1.msra.mxu0 0.0
  %2169 = vmatprep.subr.mxu0 0.0
  %2170 = vmatpush1.msra.mxu0 0.0
  %2171 = vmatprep.subr.mxu0 0.0
  %2172 = vmatpush1.msra.mxu0 0.0
  %2173 = vmatprep.subr.mxu0 0.0
  %2174 = vmatpush1.msra.mxu0 0.0
  %2175 = vmatprep.subr.mxu0 0.0
  %2176 = vmatpush1.msra.mxu0 0.0
  %2177 = vmatprep.subr.mxu0 0.0
  %2178 = vmatpush1.msra.mxu0 0.0
  %2179 = vmatprep.subr.mxu0 0.0
  %2180 = vmatpush1.msra.mxu0 0.0
  %2181 = vmatprep.subr.mxu0 0.0
  %2182 = vmatpush1.msra.mxu0 0.0
  %2183 = vmatprep.subr.mxu0 0.0
  %2184 = vmatpush1.msra.mxu0 0.0
  %2185 = vmatprep.subr.mxu0 0.0
  %2186 = vmatpush1.msra.mxu0 0.0
  %2187 = vmatprep.subr.mxu0 0.0
  %2188 = vmatpush1.msra.mxu0 0.0
  %2189 = vmatprep.subr.mxu0 0.0
  %2190 = vmatpush1.msra.mxu0 0.0
  %2191 = vmatprep.subr.mxu0 0.0
  %2192 = vmatpush1.msra.mxu0 0.0
  %2193 = vmatprep.subr.mxu0 0.0
  %2194 = vmatpush1.msra.mxu0 0.0
  %2195 = vmatprep.subr.mxu0 0.0
  %2196 = vmatpush1.msra.mxu0 0.0
  %2197 = vmatprep.subr.mxu0 0.0
  %2198 = vmatpush1.msra.mxu0 0.0
  %2199 = vmatprep.subr.mxu0 0.0
  %2200 = vmatpush1.msra.mxu0 0.0
  %2201 = vmatprep.subr.mxu0 0.0
  %2202 = vmatpush1.msra.mxu0 0.0
  %2203 = vmatprep.mubr.f32.mxu0 0.0
  %v2204 = vand.u32 %v1814, 4294901760
  %v2205 = vsub.f32 %v1814, %v2204
  %v2206 = vand.u32 %v2205, 4294901760
  %2207 = vmatmul.mubr.f32.gmra.mrb[0].mxu0 %v2206
  %v2208 = vpop.f32.mrb[0].mxu0
  %v2209 = vadd.f32 %v2125, %v2208
  %v2210 = vpop.f32.mrb[0].mxu0
  %v2211 = vadd.f32 %v2127, %v2210
  %2212 = vdwg.mxu0
  %v2213 = vand.u32 %v1793, 4294901760
  %v2214 = vsub.f32 %v1793, %v2213
  %v2215 = vand.u32 %v2214, 4294901760
  %2216 = vmatprep.subr.mxu0 %v2215
  %v2217 = vand.u32 %v1792, 4294901760
  %v2218 = vsub.f32 %v1792, %v2217
  %v2219 = vand.u32 %v2218, 4294901760
  %2220 = vmatpush1.msra.mxu0 %v2219
  %v2221 = vand.u32 %v1797, 4294901760
  %v2222 = vsub.f32 %v1797, %v2221
  %v2223 = vand.u32 %v2222, 4294901760
  %2224 = vmatprep.subr.mxu0 %v2223
  %v2225 = vand.u32 %v1796, 4294901760
  %v2226 = vsub.f32 %v1796, %v2225
  %v2227 = vand.u32 %v2226, 4294901760
  %2228 = vmatpush1.msra.mxu0 %v2227
  %v2229 = vand.u32 %v1801, 4294901760
  %v2230 = vsub.f32 %v1801, %v2229
  %v2231 = vand.u32 %v2230, 4294901760
  %2232 = vmatprep.subr.mxu0 %v2231
  %v2233 = vand.u32 %v1800, 4294901760
  %v2234 = vsub.f32 %v1800, %v2233
  %v2235 = vand.u32 %v2234, 4294901760
  %2236 = vmatpush1.msra.mxu0 %v2235
  %v2237 = vand.u32 %v1805, 4294901760
  %v2238 = vsub.f32 %v1805, %v2237
  %v2239 = vand.u32 %v2238, 4294901760
  %2240 = vmatprep.subr.mxu0 %v2239
  %v2241 = vand.u32 %v1804, 4294901760
  %v2242 = vsub.f32 %v1804, %v2241
  %v2243 = vand.u32 %v2242, 4294901760
  %2244 = vmatpush1.msra.mxu0 %v2243
  %v2245 = vand.u32 %v1820, 4294901760
  %v2246 = vsub.f32 %v1820, %v2245
  %v2247 = vand.u32 %v2246, 4294901760
  %2248 = vmatprep.subr.mxu0 %v2247
  %v2249 = vand.u32 %v1817, 4294901760
  %v2250 = vsub.f32 %v1817, %v2249
  %v2251 = vand.u32 %v2250, 4294901760
  %2252 = vmatpush1.msra.mxu0 %v2251
  %2253 = vmatprep.subr.mxu0 0.0
  %2254 = vmatpush1.msra.mxu0 0.0
  %2255 = vmatprep.subr.mxu0 0.0
  %2256 = vmatpush1.msra.mxu0 0.0
  %2257 = vmatprep.subr.mxu0 0.0
  %2258 = vmatpush1.msra.mxu0 0.0
  %2259 = vmatprep.subr.mxu0 0.0
  %2260 = vmatpush1.msra.mxu0 0.0
  %2261 = vmatprep.subr.mxu0 0.0
  %2262 = vmatpush1.msra.mxu0 0.0
  %2263 = vmatprep.subr.mxu0 0.0
  %2264 = vmatpush1.msra.mxu0 0.0
  %2265 = vmatprep.subr.mxu0 0.0
  %2266 = vmatpush1.msra.mxu0 0.0
  %2267 = vmatprep.subr.mxu0 0.0
  %2268 = vmatpush1.msra.mxu0 0.0
  %2269 = vmatprep.subr.mxu0 0.0
  %2270 = vmatpush1.msra.mxu0 0.0
  %2271 = vmatprep.subr.mxu0 0.0
  %2272 = vmatpush1.msra.mxu0 0.0
  %2273 = vmatprep.subr.mxu0 0.0
  %2274 = vmatpush1.msra.mxu0 0.0
  %2275 = vmatprep.subr.mxu0 0.0
  %2276 = vmatpush1.msra.mxu0 0.0
  %2277 = vmatprep.subr.mxu0 0.0
  %2278 = vmatpush1.msra.mxu0 0.0
  %2279 = vmatprep.subr.mxu0 0.0
  %2280 = vmatpush1.msra.mxu0 0.0
  %2281 = vmatprep.subr.mxu0 0.0
  %2282 = vmatpush1.msra.mxu0 0.0
  %2283 = vmatprep.subr.mxu0 0.0
  %2284 = vmatpush1.msra.mxu0 0.0
  %2285 = vmatprep.subr.mxu0 0.0
  %2286 = vmatpush1.msra.mxu0 0.0
  %2287 = vmatprep.subr.mxu0 0.0
  %2288 = vmatpush1.msra.mxu0 0.0
  %2289 = vmatprep.subr.mxu0 0.0
  %2290 = vmatpush1.msra.mxu0 0.0
  %2291 = vmatprep.subr.mxu0 0.0
  %2292 = vmatpush1.msra.mxu0 0.0
  %2293 = vmatprep.subr.mxu0 0.0
  %2294 = vmatpush1.msra.mxu0 0.0
  %2295 = vmatprep.subr.mxu0 0.0
  %2296 = vmatpush1.msra.mxu0 0.0
  %2297 = vmatprep.subr.mxu0 0.0
  %2298 = vmatpush1.msra.mxu0 0.0
  %2299 = vmatprep.subr.mxu0 0.0
  %2300 = vmatpush1.msra.mxu0 0.0
  %2301 = vmatprep.subr.mxu0 0.0
  %2302 = vmatpush1.msra.mxu0 0.0
  %2303 = vmatprep.subr.mxu0 0.0
  %2304 = vmatpush1.msra.mxu0 0.0
  %2305 = vmatprep.subr.mxu0 0.0
  %2306 = vmatpush1.msra.mxu0 0.0
  %2307 = vmatprep.mubr.f32.mxu0 0.0
  %v2308 = vand.u32 %v1814, 4294901760
  %2309 = vmatmul.mubr.f32.gmra.mrb[0].mxu0 %v2308
  %v2310 = vpop.f32.mrb[0].mxu0
  %v2311 = vadd.f32 %v2209, %v2310
  %v2312 = vpop.f32.mrb[0].mxu0
  %v2313 = vadd.f32 %v2211, %v2312
  %2314 = vdwg.mxu0
  %v2315 = vand.u32 %v1793, 4294901760
  %2316 = vmatprep.subr.mxu0 %v2315
  %v2317 = vand.u32 %v1792, 4294901760
  %2318 = vmatpush1.msra.mxu0 %v2317
  %v2319 = vand.u32 %v1797, 4294901760
  %2320 = vmatprep.subr.mxu0 %v2319
  %v2321 = vand.u32 %v1796, 4294901760
  %2322 = vmatpush1.msra.mxu0 %v2321
  %v2323 = vand.u32 %v1801, 4294901760
  %2324 = vmatprep.subr.mxu0 %v2323
  %v2325 = vand.u32 %v1800, 4294901760
  %2326 = vmatpush1.msra.mxu0 %v2325
  %v2327 = vand.u32 %v1805, 4294901760
  %2328 = vmatprep.subr.mxu0 %v2327
  %v2329 = vand.u32 %v1804, 4294901760
  %2330 = vmatpush1.msra.mxu0 %v2329
  %v2331 = vand.u32 %v1820, 4294901760
  %2332 = vmatprep.subr.mxu0 %v2331
  %v2333 = vand.u32 %v1817, 4294901760
  %2334 = vmatpush1.msra.mxu0 %v2333
  %2335 = vmatprep.subr.mxu0 0.0
  %2336 = vmatpush1.msra.mxu0 0.0
  %2337 = vmatprep.subr.mxu0 0.0
  %2338 = vmatpush1.msra.mxu0 0.0
  %2339 = vmatprep.subr.mxu0 0.0
  %2340 = vmatpush1.msra.mxu0 0.0
  %2341 = vmatprep.subr.mxu0 0.0
  %2342 = vmatpush1.msra.mxu0 0.0
  %2343 = vmatprep.subr.mxu0 0.0
  %2344 = vmatpush1.msra.mxu0 0.0
  %2345 = vmatprep.subr.mxu0 0.0
  %2346 = vmatpush1.msra.mxu0 0.0
  %2347 = vmatprep.subr.mxu0 0.0
  %2348 = vmatpush1.msra.mxu0 0.0
  %2349 = vmatprep.subr.mxu0 0.0
  %2350 = vmatpush1.msra.mxu0 0.0
  %2351 = vmatprep.subr.mxu0 0.0
  %2352 = vmatpush1.msra.mxu0 0.0
  %2353 = vmatprep.subr.mxu0 0.0
  %2354 = vmatpush1.msra.mxu0 0.0
  %2355 = vmatprep.subr.mxu0 0.0
  %2356 = vmatpush1.msra.mxu0 0.0
  %2357 = vmatprep.subr.mxu0 0.0
  %2358 = vmatpush1.msra.mxu0 0.0
  %2359 = vmatprep.subr.mxu0 0.0
  %2360 = vmatpush1.msra.mxu0 0.0
  %2361 = vmatprep.subr.mxu0 0.0
  %2362 = vmatpush1.msra.mxu0 0.0
  %2363 = vmatprep.subr.mxu0 0.0
  %2364 = vmatpush1.msra.mxu0 0.0
  %2365 = vmatprep.subr.mxu0 0.0
  %2366 = vmatpush1.msra.mxu0 0.0
  %2367 = vmatprep.subr.mxu0 0.0
  %2368 = vmatpush1.msra.mxu0 0.0
  %2369 = vmatprep.subr.mxu0 0.0
  %2370 = vmatpush1.msra.mxu0 0.0
  %2371 = vmatprep.subr.mxu0 0.0
  %2372 = vmatpush1.msra.mxu0 0.0
  %2373 = vmatprep.subr.mxu0 0.0
  %2374 = vmatpush1.msra.mxu0 0.0
  %2375 = vmatprep.subr.mxu0 0.0
  %2376 = vmatpush1.msra.mxu0 0.0
  %2377 = vmatprep.subr.mxu0 0.0
  %2378 = vmatpush1.msra.mxu0 0.0
  %2379 = vmatprep.subr.mxu0 0.0
  %2380 = vmatpush1.msra.mxu0 0.0
  %2381 = vmatprep.subr.mxu0 0.0
  %2382 = vmatpush1.msra.mxu0 0.0
  %2383 = vmatprep.subr.mxu0 0.0
  %2384 = vmatpush1.msra.mxu0 0.0
  %2385 = vmatprep.subr.mxu0 0.0
  %2386 = vmatpush1.msra.mxu0 0.0
  %2387 = vmatprep.subr.mxu0 0.0
  %2388 = vmatpush1.msra.mxu0 0.0
  %2389 = vmatprep.mubr.f32.mxu0 0.0
  %v2390 = vand.u32 %v1814, 4294901760
  %2391 = vmatmul.mubr.f32.gmra.mrb[0].mxu0 %v2390
  %v2392 = vpop.f32.mrb[0].mxu0
  %v2393 = vadd.f32 %v2311, %v2392
  %v2394 = vpop.f32.mrb[0].mxu0
  %v2395 = vadd.f32 %v2313, %v2394
  %2396 = vdwg.mxu0
  %v2397 = vand.u32 %v1795, 4294901760
  %2398 = vmatprep.subr.mxu0 %v2397
  %v2399 = vand.u32 %v1794, 4294901760
  %2400 = vmatpush1.msra.mxu0 %v2399
  %v2401 = vand.u32 %v1799, 4294901760
  %2402 = vmatprep.subr.mxu0 %v2401
  %v2403 = vand.u32 %v1798, 4294901760
  %2404 = vmatpush1.msra.mxu0 %v2403
  %v2405 = vand.u32 %v1803, 4294901760
  %2406 = vmatprep.subr.mxu0 %v2405
  %v2407 = vand.u32 %v1802, 4294901760
  %2408 = vmatpush1.msra.mxu0 %v2407
  %v2409 = vand.u32 %v1807, 4294901760
  %2410 = vmatprep.subr.mxu0 %v2409
  %v2411 = vand.u32 %v1806, 4294901760
  %2412 = vmatpush1.msra.mxu0 %v2411
  %v2413 = vand.u32 %v1826, 4294901760
  %2414 = vmatprep.subr.mxu0 %v2413
  %v2415 = vand.u32 %v1823, 4294901760
  %2416 = vmatpush1.msra.mxu0 %v2415
  %2417 = vmatprep.subr.mxu0 0.0
  %2418 = vmatpush1.msra.mxu0 0.0
  %2419 = vmatprep.subr.mxu0 0.0
  %2420 = vmatpush1.msra.mxu0 0.0
  %2421 = vmatprep.subr.mxu0 0.0
  %2422 = vmatpush1.msra.mxu0 0.0
  %2423 = vmatprep.subr.mxu0 0.0
  %2424 = vmatpush1.msra.mxu0 0.0
  %2425 = vmatprep.subr.mxu0 0.0
  %2426 = vmatpush1.msra.mxu0 0.0
  %2427 = vmatprep.subr.mxu0 0.0
  %2428 = vmatpush1.msra.mxu0 0.0
  %2429 = vmatprep.subr.mxu0 0.0
  %2430 = vmatpush1.msra.mxu0 0.0
  %2431 = vmatprep.subr.mxu0 0.0
  %2432 = vmatpush1.msra.mxu0 0.0
  %2433 = vmatprep.subr.mxu0 0.0
  %2434 = vmatpush1.msra.mxu0 0.0
  %2435 = vmatprep.subr.mxu0 0.0
  %2436 = vmatpush1.msra.mxu0 0.0
  %2437 = vmatprep.subr.mxu0 0.0
  %2438 = vmatpush1.msra.mxu0 0.0
  %2439 = vmatprep.subr.mxu0 0.0
  %2440 = vmatpush1.msra.mxu0 0.0
  %2441 = vmatprep.subr.mxu0 0.0
  %2442 = vmatpush1.msra.mxu0 0.0
  %2443 = vmatprep.subr.mxu0 0.0
  %2444 = vmatpush1.msra.mxu0 0.0
  %2445 = vmatprep.subr.mxu0 0.0
  %2446 = vmatpush1.msra.mxu0 0.0
  %2447 = vmatprep.subr.mxu0 0.0
  %2448 = vmatpush1.msra.mxu0 0.0
  %2449 = vmatprep.subr.mxu0 0.0
  %2450 = vmatpush1.msra.mxu0 0.0
  %2451 = vmatprep.subr.mxu0 0.0
  %2452 = vmatpush1.msra.mxu0 0.0
  %2453 = vmatprep.subr.mxu0 0.0
  %2454 = vmatpush1.msra.mxu0 0.0
  %2455 = vmatprep.subr.mxu0 0.0
  %2456 = vmatpush1.msra.mxu0 0.0
  %2457 = vmatprep.subr.mxu0 0.0
  %2458 = vmatpush1.msra.mxu0 0.0
  %2459 = vmatprep.subr.mxu0 0.0
  %2460 = vmatpush1.msra.mxu0 0.0
  %2461 = vmatprep.subr.mxu0 0.0
  %2462 = vmatpush1.msra.mxu0 0.0
  %2463 = vmatprep.subr.mxu0 0.0
  %2464 = vmatpush1.msra.mxu0 0.0
  %2465 = vmatprep.subr.mxu0 0.0
  %2466 = vmatpush1.msra.mxu0 0.0
  %2467 = vmatprep.subr.mxu0 0.0
  %2468 = vmatpush1.msra.mxu0 0.0
  %2469 = vmatprep.subr.mxu0 0.0
  %2470 = vmatpush1.msra.mxu0 0.0
  %2471 = vmatprep.mubr.f32.mxu0 0.0
  %v2472 = vand.u32 %v1814, 4294901760
  %v2473 = vsub.f32 %v1814, %v2472
  %v2474 = vand.u32 %v2473, 4294901760
  %v2475 = vsub.f32 %v2473, %v2474
  %v2476 = vand.u32 %v2475, 4294901760
  %2477 = vmatmul.mubr.f32.gmra.mrb[0].mxu0 %v2476
  %v2478 = vpop.f32.mrb[0].mxu0
  %v2479 = vadd.f32 %v1811, %v2478
  %v2480 = vpop.f32.mrb[0].mxu0
  %v2481 = vadd.f32 %v1811, %v2480
  %2482 = vdwg.mxu0
  %v2483 = vand.u32 %v1795, 4294901760
  %v2484 = vsub.f32 %v1795, %v2483
  %v2485 = vand.u32 %v2484, 4294901760
  %v2486 = vsub.f32 %v2484, %v2485
  %v2487 = vand.u32 %v2486, 4294901760
  %2488 = vmatprep.subr.mxu0 %v2487
  %v2489 = vand.u32 %v1794, 4294901760
  %v2490 = vsub.f32 %v1794, %v2489
  %v2491 = vand.u32 %v2490, 4294901760
  %v2492 = vsub.f32 %v2490, %v2491
  %v2493 = vand.u32 %v2492, 4294901760
  %2494 = vmatpush1.msra.mxu0 %v2493
  %v2495 = vand.u32 %v1799, 4294901760
  %v2496 = vsub.f32 %v1799, %v2495
  %v2497 = vand.u32 %v2496, 4294901760
  %v2498 = vsub.f32 %v2496, %v2497
  %v2499 = vand.u32 %v2498, 4294901760
  %2500 = vmatprep.subr.mxu0 %v2499
  %v2501 = vand.u32 %v1798, 4294901760
  %v2502 = vsub.f32 %v1798, %v2501
  %v2503 = vand.u32 %v2502, 4294901760
  %v2504 = vsub.f32 %v2502, %v2503
  %v2505 = vand.u32 %v2504, 4294901760
  %2506 = vmatpush1.msra.mxu0 %v2505
  %v2507 = vand.u32 %v1803, 4294901760
  %v2508 = vsub.f32 %v1803, %v2507
  %v2509 = vand.u32 %v2508, 4294901760
  %v2510 = vsub.f32 %v2508, %v2509
  %v2511 = vand.u32 %v2510, 4294901760
  %2512 = vmatprep.subr.mxu0 %v2511
  %v2513 = vand.u32 %v1802, 4294901760
  %v2514 = vsub.f32 %v1802, %v2513
  %v2515 = vand.u32 %v2514, 4294901760
  %v2516 = vsub.f32 %v2514, %v2515
  %v2517 = vand.u32 %v2516, 4294901760
  %2518 = vmatpush1.msra.mxu0 %v2517
  %v2519 = vand.u32 %v1807, 4294901760
  %v2520 = vsub.f32 %v1807, %v2519
  %v2521 = vand.u32 %v2520, 4294901760
  %v2522 = vsub.f32 %v2520, %v2521
  %v2523 = vand.u32 %v2522, 4294901760
  %2524 = vmatprep.subr.mxu0 %v2523
  %v2525 = vand.u32 %v1806, 4294901760
  %v2526 = vsub.f32 %v1806, %v2525
  %v2527 = vand.u32 %v2526, 4294901760
  %v2528 = vsub.f32 %v2526, %v2527
  %v2529 = vand.u32 %v2528, 4294901760
  %2530 = vmatpush1.msra.mxu0 %v2529
  %v2531 = vand.u32 %v1826, 4294901760
  %v2532 = vsub.f32 %v1826, %v2531
  %v2533 = vand.u32 %v2532, 4294901760
  %v2534 = vsub.f32 %v2532, %v2533
  %v2535 = vand.u32 %v2534, 4294901760
  %2536 = vmatprep.subr.mxu0 %v2535
  %v2537 = vand.u32 %v1823, 4294901760
  %v2538 = vsub.f32 %v1823, %v2537
  %v2539 = vand.u32 %v2538, 4294901760
  %v2540 = vsub.f32 %v2538, %v2539
  %v2541 = vand.u32 %v2540, 4294901760
  %2542 = vmatpush1.msra.mxu0 %v2541
  %2543 = vmatprep.subr.mxu0 0.0
  %2544 = vmatpush1.msra.mxu0 0.0
  %2545 = vmatprep.subr.mxu0 0.0
  %2546 = vmatpush1.msra.mxu0 0.0
  %2547 = vmatprep.subr.mxu0 0.0
  %2548 = vmatpush1.msra.mxu0 0.0
  %2549 = vmatprep.subr.mxu0 0.0
  %2550 = vmatpush1.msra.mxu0 0.0
  %2551 = vmatprep.subr.mxu0 0.0
  %2552 = vmatpush1.msra.mxu0 0.0
  %2553 = vmatprep.subr.mxu0 0.0
  %2554 = vmatpush1.msra.mxu0 0.0
  %2555 = vmatprep.subr.mxu0 0.0
  %2556 = vmatpush1.msra.mxu0 0.0
  %2557 = vmatprep.subr.mxu0 0.0
  %2558 = vmatpush1.msra.mxu0 0.0
  %2559 = vmatprep.subr.mxu0 0.0
  %2560 = vmatpush1.msra.mxu0 0.0
  %2561 = vmatprep.subr.mxu0 0.0
  %2562 = vmatpush1.msra.mxu0 0.0
  %2563 = vmatprep.subr.mxu0 0.0
  %2564 = vmatpush1.msra.mxu0 0.0
  %2565 = vmatprep.subr.mxu0 0.0
  %2566 = vmatpush1.msra.mxu0 0.0
  %2567 = vmatprep.subr.mxu0 0.0
  %2568 = vmatpush1.msra.mxu0 0.0
  %2569 = vmatprep.subr.mxu0 0.0
  %2570 = vmatpush1.msra.mxu0 0.0
  %2571 = vmatprep.subr.mxu0 0.0
  %2572 = vmatpush1.msra.mxu0 0.0
  %2573 = vmatprep.subr.mxu0 0.0
  %2574 = vmatpush1.msra.mxu0 0.0
  %2575 = vmatprep.subr.mxu0 0.0
  %2576 = vmatpush1.msra.mxu0 0.0
  %2577 = vmatprep.subr.mxu0 0.0
  %2578 = vmatpush1.msra.mxu0 0.0
  %2579 = vmatprep.subr.mxu0 0.0
  %2580 = vmatpush1.msra.mxu0 0.0
  %2581 = vmatprep.subr.mxu0 0.0
  %2582 = vmatpush1.msra.mxu0 0.0
  %2583 = vmatprep.subr.mxu0 0.0
  %2584 = vmatpush1.msra.mxu0 0.0
  %2585 = vmatprep.subr.mxu0 0.0
  %2586 = vmatpush1.msra.mxu0 0.0
  %2587 = vmatprep.subr.mxu0 0.0
  %2588 = vmatpush1.msra.mxu0 0.0
  %2589 = vmatprep.subr.mxu0 0.0
  %2590 = vmatpush1.msra.mxu0 0.0
  %2591 = vmatprep.subr.mxu0 0.0
  %2592 = vmatpush1.msra.mxu0 0.0
  %2593 = vmatprep.subr.mxu0 0.0
  %2594 = vmatpush1.msra.mxu0 0.0
  %2595 = vmatprep.subr.mxu0 0.0
  %2596 = vmatpush1.msra.mxu0 0.0
  %2597 = vmatprep.mubr.f32.mxu0 0.0
  %v2598 = vand.u32 %v1814, 4294901760
  %2599 = vmatmul.mubr.f32.gmra.mrb[0].mxu0 %v2598
  %v2600 = vpop.f32.mrb[0].mxu0
  %v2601 = vadd.f32 %v2479, %v2600
  %v2602 = vpop.f32.mrb[0].mxu0
  %v2603 = vadd.f32 %v2481, %v2602
  %2604 = vdwg.mxu0
  %v2605 = vand.u32 %v1795, 4294901760
  %v2606 = vsub.f32 %v1795, %v2605
  %2607 = vmatprep.subr.mxu0 %v2606
  %v2608 = vand.u32 %v1794, 4294901760
  %v2609 = vsub.f32 %v1794, %v2608
  %2610 = vmatpush1.msra.mxu0 %v2609
  %v2611 = vand.u32 %v1799, 4294901760
  %v2612 = vsub.f32 %v1799, %v2611
  %2613 = vmatprep.subr.mxu0 %v2612
  %v2614 = vand.u32 %v1798, 4294901760
  %v2615 = vsub.f32 %v1798, %v2614
  %2616 = vmatpush1.msra.mxu0 %v2615
  %v2617 = vand.u32 %v1803, 4294901760
  %v2618 = vsub.f32 %v1803, %v2617
  %2619 = vmatprep.subr.mxu0 %v2618
  %v2620 = vand.u32 %v1802, 4294901760
  %v2621 = vsub.f32 %v1802, %v2620
  %2622 = vmatpush1.msra.mxu0 %v2621
  %v2623 = vand.u32 %v1807, 4294901760
  %v2624 = vsub.f32 %v1807, %v2623
  %2625 = vmatprep.subr.mxu0 %v2624
  %v2626 = vand.u32 %v1806, 4294901760
  %v2627 = vsub.f32 %v1806, %v2626
  %2628 = vmatpush1.msra.mxu0 %v2627
  %v2629 = vand.u32 %v1826, 4294901760
  %v2630 = vsub.f32 %v1826, %v2629
  %2631 = vmatprep.subr.mxu0 %v2630
  %v2632 = vand.u32 %v1823, 4294901760
  %v2633 = vsub.f32 %v1823, %v2632
  %2634 = vmatpush1.msra.mxu0 %v2633
  %2635 = vmatprep.subr.mxu0 0.0
  %2636 = vmatpush1.msra.mxu0 0.0
  %2637 = vmatprep.subr.mxu0 0.0
  %2638 = vmatpush1.msra.mxu0 0.0
  %2639 = vmatprep.subr.mxu0 0.0
  %2640 = vmatpush1.msra.mxu0 0.0
  %2641 = vmatprep.subr.mxu0 0.0
  %2642 = vmatpush1.msra.mxu0 0.0
  %2643 = vmatprep.subr.mxu0 0.0
  %2644 = vmatpush1.msra.mxu0 0.0
  %2645 = vmatprep.subr.mxu0 0.0
  %2646 = vmatpush1.msra.mxu0 0.0
  %2647 = vmatprep.subr.mxu0 0.0
  %2648 = vmatpush1.msra.mxu0 0.0
  %2649 = vmatprep.subr.mxu0 0.0
  %2650 = vmatpush1.msra.mxu0 0.0
  %2651 = vmatprep.subr.mxu0 0.0
  %2652 = vmatpush1.msra.mxu0 0.0
  %2653 = vmatprep.subr.mxu0 0.0
  %2654 = vmatpush1.msra.mxu0 0.0
  %2655 = vmatprep.subr.mxu0 0.0
  %2656 = vmatpush1.msra.mxu0 0.0
  %2657 = vmatprep.subr.mxu0 0.0
  %2658 = vmatpush1.msra.mxu0 0.0
  %2659 = vmatprep.subr.mxu0 0.0
  %2660 = vmatpush1.msra.mxu0 0.0
  %2661 = vmatprep.subr.mxu0 0.0
  %2662 = vmatpush1.msra.mxu0 0.0
  %2663 = vmatprep.subr.mxu0 0.0
  %2664 = vmatpush1.msra.mxu0 0.0
  %2665 = vmatprep.subr.mxu0 0.0
  %2666 = vmatpush1.msra.mxu0 0.0
  %2667 = vmatprep.subr.mxu0 0.0
  %2668 = vmatpush1.msra.mxu0 0.0
  %2669 = vmatprep.subr.mxu0 0.0
  %2670 = vmatpush1.msra.mxu0 0.0
  %2671 = vmatprep.subr.mxu0 0.0
  %2672 = vmatpush1.msra.mxu0 0.0
  %2673 = vmatprep.subr.mxu0 0.0
  %2674 = vmatpush1.msra.mxu0 0.0
  %2675 = vmatprep.subr.mxu0 0.0
  %2676 = vmatpush1.msra.mxu0 0.0
  %2677 = vmatprep.subr.mxu0 0.0
  %2678 = vmatpush1.msra.mxu0 0.0
  %2679 = vmatprep.subr.mxu0 0.0
  %2680 = vmatpush1.msra.mxu0 0.0
  %2681 = vmatprep.subr.mxu0 0.0
  %2682 = vmatpush1.msra.mxu0 0.0
  %2683 = vmatprep.subr.mxu0 0.0
  %2684 = vmatpush1.msra.mxu0 0.0
  %2685 = vmatprep.subr.mxu0 0.0
  %2686 = vmatpush1.msra.mxu0 0.0
  %2687 = vmatprep.subr.mxu0 0.0
  %2688 = vmatpush1.msra.mxu0 0.0
  %2689 = vmatprep.mubr.f32.mxu0 0.0
  %v2690 = vand.u32 %v1814, 4294901760
  %v2691 = vsub.f32 %v1814, %v2690
  %2692 = vmatmul.mubr.f32.gmra.mrb[0].mxu0 %v2691
  %v2693 = vpop.f32.mrb[0].mxu0
  %v2694 = vadd.f32 %v2601, %v2693
  %v2695 = vpop.f32.mrb[0].mxu0
  %v2696 = vadd.f32 %v2603, %v2695
  %2697 = vdwg.mxu0
  %v2698 = vand.u32 %v1795, 4294901760
  %2699 = vmatprep.subr.mxu0 %v2698
  %v2700 = vand.u32 %v1794, 4294901760
  %2701 = vmatpush1.msra.mxu0 %v2700
  %v2702 = vand.u32 %v1799, 4294901760
  %2703 = vmatprep.subr.mxu0 %v2702
  %v2704 = vand.u32 %v1798, 4294901760
  %2705 = vmatpush1.msra.mxu0 %v2704
  %v2706 = vand.u32 %v1803, 4294901760
  %2707 = vmatprep.subr.mxu0 %v2706
  %v2708 = vand.u32 %v1802, 4294901760
  %2709 = vmatpush1.msra.mxu0 %v2708
  %v2710 = vand.u32 %v1807, 4294901760
  %2711 = vmatprep.subr.mxu0 %v2710
  %v2712 = vand.u32 %v1806, 4294901760
  %2713 = vmatpush1.msra.mxu0 %v2712
  %v2714 = vand.u32 %v1826, 4294901760
  %2715 = vmatprep.subr.mxu0 %v2714
  %v2716 = vand.u32 %v1823, 4294901760
  %2717 = vmatpush1.msra.mxu0 %v2716
  %2718 = vmatprep.subr.mxu0 0.0
  %2719 = vmatpush1.msra.mxu0 0.0
  %2720 = vmatprep.subr.mxu0 0.0
  %2721 = vmatpush1.msra.mxu0 0.0
  %2722 = vmatprep.subr.mxu0 0.0
  %2723 = vmatpush1.msra.mxu0 0.0
  %2724 = vmatprep.subr.mxu0 0.0
  %2725 = vmatpush1.msra.mxu0 0.0
  %2726 = vmatprep.subr.mxu0 0.0
  %2727 = vmatpush1.msra.mxu0 0.0
  %2728 = vmatprep.subr.mxu0 0.0
  %2729 = vmatpush1.msra.mxu0 0.0
  %2730 = vmatprep.subr.mxu0 0.0
  %2731 = vmatpush1.msra.mxu0 0.0
  %2732 = vmatprep.subr.mxu0 0.0
  %2733 = vmatpush1.msra.mxu0 0.0
  %2734 = vmatprep.subr.mxu0 0.0
  %2735 = vmatpush1.msra.mxu0 0.0
  %2736 = vmatprep.subr.mxu0 0.0
  %2737 = vmatpush1.msra.mxu0 0.0
  %2738 = vmatprep.subr.mxu0 0.0
  %2739 = vmatpush1.msra.mxu0 0.0
  %2740 = vmatprep.subr.mxu0 0.0
  %2741 = vmatpush1.msra.mxu0 0.0
  %2742 = vmatprep.subr.mxu0 0.0
  %2743 = vmatpush1.msra.mxu0 0.0
  %2744 = vmatprep.subr.mxu0 0.0
  %2745 = vmatpush1.msra.mxu0 0.0
  %2746 = vmatprep.subr.mxu0 0.0
  %2747 = vmatpush1.msra.mxu0 0.0
  %2748 = vmatprep.subr.mxu0 0.0
  %2749 = vmatpush1.msra.mxu0 0.0
  %2750 = vmatprep.subr.mxu0 0.0
  %2751 = vmatpush1.msra.mxu0 0.0
  %2752 = vmatprep.subr.mxu0 0.0
  %2753 = vmatpush1.msra.mxu0 0.0
  %2754 = vmatprep.subr.mxu0 0.0
  %2755 = vmatpush1.msra.mxu0 0.0
  %2756 = vmatprep.subr.mxu0 0.0
  %2757 = vmatpush1.msra.mxu0 0.0
  %2758 = vmatprep.subr.mxu0 0.0
  %2759 = vmatpush1.msra.mxu0 0.0
  %2760 = vmatprep.subr.mxu0 0.0
  %2761 = vmatpush1.msra.mxu0 0.0
  %2762 = vmatprep.subr.mxu0 0.0
  %2763 = vmatpush1.msra.mxu0 0.0
  %2764 = vmatprep.subr.mxu0 0.0
  %2765 = vmatpush1.msra.mxu0 0.0
  %2766 = vmatprep.subr.mxu0 0.0
  %2767 = vmatpush1.msra.mxu0 0.0
  %2768 = vmatprep.subr.mxu0 0.0
  %2769 = vmatpush1.msra.mxu0 0.0
  %2770 = vmatprep.subr.mxu0 0.0
  %2771 = vmatpush1.msra.mxu0 0.0
  %2772 = vmatprep.mubr.f32.mxu0 0.0
  %v2773 = vand.u32 %v1814, 4294901760
  %v2774 = vsub.f32 %v1814, %v2773
  %v2775 = vand.u32 %v2774, 4294901760
  %2776 = vmatmul.mubr.f32.gmra.mrb[0].mxu0 %v2775
  %v2777 = vpop.f32.mrb[0].mxu0
  %v2778 = vadd.f32 %v2694, %v2777
  %v2779 = vpop.f32.mrb[0].mxu0
  %v2780 = vadd.f32 %v2696, %v2779
  %2781 = vdwg.mxu0
  %v2782 = vand.u32 %v1795, 4294901760
  %v2783 = vsub.f32 %v1795, %v2782
  %v2784 = vand.u32 %v2783, 4294901760
  %2785 = vmatprep.subr.mxu0 %v2784
  %v2786 = vand.u32 %v1794, 4294901760
  %v2787 = vsub.f32 %v1794, %v2786
  %v2788 = vand.u32 %v2787, 4294901760
  %2789 = vmatpush1.msra.mxu0 %v2788
  %v2790 = vand.u32 %v1799, 4294901760
  %v2791 = vsub.f32 %v1799, %v2790
  %v2792 = vand.u32 %v2791, 4294901760
  %2793 = vmatprep.subr.mxu0 %v2792
  %v2794 = vand.u32 %v1798, 4294901760
  %v2795 = vsub.f32 %v1798, %v2794
  %v2796 = vand.u32 %v2795, 4294901760
  %2797 = vmatpush1.msra.mxu0 %v2796
  %v2798 = vand.u32 %v1803, 4294901760
  %v2799 = vsub.f32 %v1803, %v2798
  %v2800 = vand.u32 %v2799, 4294901760
  %2801 = vmatprep.subr.mxu0 %v2800
  %v2802 = vand.u32 %v1802, 4294901760
  %v2803 = vsub.f32 %v1802, %v2802
  %v2804 = vand.u32 %v2803, 4294901760
  %2805 = vmatpush1.msra.mxu0 %v2804
  %v2806 = vand.u32 %v1807, 4294901760
  %v2807 = vsub.f32 %v1807, %v2806
  %v2808 = vand.u32 %v2807, 4294901760
  %2809 = vmatprep.subr.mxu0 %v2808
  %v2810 = vand.u32 %v1806, 4294901760
  %v2811 = vsub.f32 %v1806, %v2810
  %v2812 = vand.u32 %v2811, 4294901760
  %2813 = vmatpush1.msra.mxu0 %v2812
  %v2814 = vand.u32 %v1826, 4294901760
  %v2815 = vsub.f32 %v1826, %v2814
  %v2816 = vand.u32 %v2815, 4294901760
  %2817 = vmatprep.subr.mxu0 %v2816
  %v2818 = vand.u32 %v1823, 4294901760
  %v2819 = vsub.f32 %v1823, %v2818
  %v2820 = vand.u32 %v2819, 4294901760
  %2821 = vmatpush1.msra.mxu0 %v2820
  %2822 = vmatprep.subr.mxu0 0.0
  %2823 = vmatpush1.msra.mxu0 0.0
  %2824 = vmatprep.subr.mxu0 0.0
  %2825 = vmatpush1.msra.mxu0 0.0
  %2826 = vmatprep.subr.mxu0 0.0
  %2827 = vmatpush1.msra.mxu0 0.0
  %2828 = vmatprep.subr.mxu0 0.0
  %2829 = vmatpush1.msra.mxu0 0.0
  %2830 = vmatprep.subr.mxu0 0.0
  %2831 = vmatpush1.msra.mxu0 0.0
  %2832 = vmatprep.subr.mxu0 0.0
  %2833 = vmatpush1.msra.mxu0 0.0
  %2834 = vmatprep.subr.mxu0 0.0
  %2835 = vmatpush1.msra.mxu0 0.0
  %2836 = vmatprep.subr.mxu0 0.0
  %2837 = vmatpush1.msra.mxu0 0.0
  %2838 = vmatprep.subr.mxu0 0.0
  %2839 = vmatpush1.msra.mxu0 0.0
  %2840 = vmatprep.subr.mxu0 0.0
  %2841 = vmatpush1.msra.mxu0 0.0
  %2842 = vmatprep.subr.mxu0 0.0
  %2843 = vmatpush1.msra.mxu0 0.0
  %2844 = vmatprep.subr.mxu0 0.0
  %2845 = vmatpush1.msra.mxu0 0.0
  %2846 = vmatprep.subr.mxu0 0.0
  %2847 = vmatpush1.msra.mxu0 0.0
  %2848 = vmatprep.subr.mxu0 0.0
  %2849 = vmatpush1.msra.mxu0 0.0
  %2850 = vmatprep.subr.mxu0 0.0
  %2851 = vmatpush1.msra.mxu0 0.0
  %2852 = vmatprep.subr.mxu0 0.0
  %2853 = vmatpush1.msra.mxu0 0.0
  %2854 = vmatprep.subr.mxu0 0.0
  %2855 = vmatpush1.msra.mxu0 0.0
  %2856 = vmatprep.subr.mxu0 0.0
  %2857 = vmatpush1.msra.mxu0 0.0
  %2858 = vmatprep.subr.mxu0 0.0
  %2859 = vmatpush1.msra.mxu0 0.0
  %2860 = vmatprep.subr.mxu0 0.0
  %2861 = vmatpush1.msra.mxu0 0.0
  %2862 = vmatprep.subr.mxu0 0.0
  %2863 = vmatpush1.msra.mxu0 0.0
  %2864 = vmatprep.subr.mxu0 0.0
  %2865 = vmatpush1.msra.mxu0 0.0
  %2866 = vmatprep.subr.mxu0 0.0
  %2867 = vmatpush1.msra.mxu0 0.0
  %2868 = vmatprep.subr.mxu0 0.0
  %2869 = vmatpush1.msra.mxu0 0.0
  %2870 = vmatprep.subr.mxu0 0.0
  %2871 = vmatpush1.msra.mxu0 0.0
  %2872 = vmatprep.subr.mxu0 0.0
  %2873 = vmatpush1.msra.mxu0 0.0
  %2874 = vmatprep.subr.mxu0 0.0
  %2875 = vmatpush1.msra.mxu0 0.0
  %2876 = vmatprep.mubr.f32.mxu0 0.0
  %v2877 = vand.u32 %v1814, 4294901760
  %2878 = vmatmul.mubr.f32.gmra.mrb[0].mxu0 %v2877
  %v2879 = vpop.f32.mrb[0].mxu0
  %v2880 = vadd.f32 %v2778, %v2879
  %v2881 = vpop.f32.mrb[0].mxu0
  %v2882 = vadd.f32 %v2780, %v2881
  %2883 = vdwg.mxu0
  %v2884 = vand.u32 %v1795, 4294901760
  %2885 = vmatprep.subr.mxu0 %v2884
  %v2886 = vand.u32 %v1794, 4294901760
  %2887 = vmatpush1.msra.mxu0 %v2886
  %v2888 = vand.u32 %v1799, 4294901760
  %2889 = vmatprep.subr.mxu0 %v2888
  %v2890 = vand.u32 %v1798, 4294901760
  %2891 = vmatpush1.msra.mxu0 %v2890
  %v2892 = vand.u32 %v1803, 4294901760
  %2893 = vmatprep.subr.mxu0 %v2892
  %v2894 = vand.u32 %v1802, 4294901760
  %2895 = vmatpush1.msra.mxu0 %v2894
  %v2896 = vand.u32 %v1807, 4294901760
  %2897 = vmatprep.subr.mxu0 %v2896
  %v2898 = vand.u32 %v1806, 4294901760
  %2899 = vmatpush1.msra.mxu0 %v2898
  %v2900 = vand.u32 %v1826, 4294901760
  %2901 = vmatprep.subr.mxu0 %v2900
  %v2902 = vand.u32 %v1823, 4294901760
  %2903 = vmatpush1.msra.mxu0 %v2902
  %2904 = vmatprep.subr.mxu0 0.0
  %2905 = vmatpush1.msra.mxu0 0.0
  %2906 = vmatprep.subr.mxu0 0.0
  %2907 = vmatpush1.msra.mxu0 0.0
  %2908 = vmatprep.subr.mxu0 0.0
  %2909 = vmatpush1.msra.mxu0 0.0
  %2910 = vmatprep.subr.mxu0 0.0
  %2911 = vmatpush1.msra.mxu0 0.0
  %2912 = vmatprep.subr.mxu0 0.0
  %2913 = vmatpush1.msra.mxu0 0.0
  %2914 = vmatprep.subr.mxu0 0.0
  %2915 = vmatpush1.msra.mxu0 0.0
  %2916 = vmatprep.subr.mxu0 0.0
  %2917 = vmatpush1.msra.mxu0 0.0
  %2918 = vmatprep.subr.mxu0 0.0
  %2919 = vmatpush1.msra.mxu0 0.0
  %2920 = vmatprep.subr.mxu0 0.0
  %2921 = vmatpush1.msra.mxu0 0.0
  %2922 = vmatprep.subr.mxu0 0.0
  %2923 = vmatpush1.msra.mxu0 0.0
  %2924 = vmatprep.subr.mxu0 0.0
  %2925 = vmatpush1.msra.mxu0 0.0
  %2926 = vmatprep.subr.mxu0 0.0
  %2927 = vmatpush1.msra.mxu0 0.0
  %2928 = vmatprep.subr.mxu0 0.0
  %2929 = vmatpush1.msra.mxu0 0.0
  %2930 = vmatprep.subr.mxu0 0.0
  %2931 = vmatpush1.msra.mxu0 0.0
  %2932 = vmatprep.subr.mxu0 0.0
  %2933 = vmatpush1.msra.mxu0 0.0
  %2934 = vmatprep.subr.mxu0 0.0
  %2935 = vmatpush1.msra.mxu0 0.0
  %2936 = vmatprep.subr.mxu0 0.0
  %2937 = vmatpush1.msra.mxu0 0.0
  %2938 = vmatprep.subr.mxu0 0.0
  %2939 = vmatpush1.msra.mxu0 0.0
  %2940 = vmatprep.subr.mxu0 0.0
  %2941 = vmatpush1.msra.mxu0 0.0
  %2942 = vmatprep.subr.mxu0 0.0
  %2943 = vmatpush1.msra.mxu0 0.0
  %2944 = vmatprep.subr.mxu0 0.0
  %2945 = vmatpush1.msra.mxu0 0.0
  %2946 = vmatprep.subr.mxu0 0.0
  %2947 = vmatpush1.msra.mxu0 0.0
  %2948 = vmatprep.subr.mxu0 0.0
  %2949 = vmatpush1.msra.mxu0 0.0
  %2950 = vmatprep.subr.mxu0 0.0
  %2951 = vmatpush1.msra.mxu0 0.0
  %2952 = vmatprep.subr.mxu0 0.0
  %2953 = vmatpush1.msra.mxu0 0.0
  %2954 = vmatprep.subr.mxu0 0.0
  %2955 = vmatpush1.msra.mxu0 0.0
  %2956 = vmatprep.subr.mxu0 0.0
  %2957 = vmatpush1.msra.mxu0 0.0
  %2958 = vmatprep.mubr.f32.mxu0 0.0
  %v2959 = vand.u32 %v1814, 4294901760
  %2960 = vmatmul.mubr.f32.gmra.mrb[0].mxu0 %v2959
  %v2961 = vpop.f32.mrb[0].mxu0
  %v2962 = vadd.f32 %v2880, %v2961
  %v2963 = vpop.f32.mrb[0].mxu0
  %v2964 = vadd.f32 %v2882, %v2963
  %2965 = vdwg.mxu0
  %v2966 = vsel %vm378, %v2393, 0.0
  %v2967 = vsel %vm378, %v2395, 0.0
  %v2968 = vadd.f32 %v2966, %v2967
  %v2969 = vsel %vm378, %v2962, 0.0
  %v2970 = vadd.f32 %v2968, %v2969
  %v2971 = vsel %vm378, %v2964, 0.0
  %v2972 = vadd.f32 %v2970, %v2971
  %2973 = vadd.xlane.f32.xlu0 %v2972
  %v2974 = vpop.xlane.xlu0 %2973
  %v2975 = vmul.f32 %v2974, 0.001953125
  %v2976 = vsub.f32 %v2393, %v2975
  %v2977 = vsub.f32 %v2395, %v2975
  %v2978 = vsub.f32 %v2962, %v2975
  %v2979 = vsub.f32 %v2964, %v2975
  %v2980 = vmul.f32 %v2976, %v2976
  %v2981 = vmul.f32 %v2977, %v2977
  %v2982 = vmul.f32 %v2978, %v2978
  %v2983 = vmul.f32 %v2979, %v2979
  %v2984 = vsel %vm378, %v2980, 0.0
  %v2985 = vsel %vm378, %v2981, 0.0
  %v2986 = vadd.f32 %v2984, %v2985
  %v2987 = vsel %vm378, %v2982, 0.0
  %v2988 = vadd.f32 %v2986, %v2987
  %v2989 = vsel %vm378, %v2983, 0.0
  %v2990 = vadd.f32 %v2988, %v2989
  %2991 = vadd.xlane.f32.xlu0 %v2990
  %v2992 = vpop.xlane.xlu0 %2991
  %v2993 = vmul.f32 %v2992, 0.001953125
  %v2994 = vadd.f32 %v2993, 1e-05
  %v2995 = vrsqrt.pop %v2994
  %v2996 = vmul.f32 %v2995, %v54
  %2998 = vset.pattern.permute.xlu0 0
  %2999 = vperm.xlu0 %2998, %v2996
  %v3000 = vpop.permute.xlu0 %2999
  %v3002 = vmul.f32 %v2976, %v3000
  %v3003 = vmul.f32 %v2977, %v3000
  %v3004 = vmul.f32 %v2978, %v3000
  %v3005 = vmul.f32 %v2979, %v3000
  %3007 = vset.pattern.permute.xlu0 0
  %3008 = vperm.xlu0 %3007, %v56
  %v3009 = vpop.permute.xlu0 %3008
  %v3011 = vadd.f32 %v3002, %v3009
  %v3012 = vadd.f32 %v3003, %v3009
  %v3013 = vadd.f32 %v3004, %v3009
  %v3014 = vadd.f32 %v3005, %v3009
  %v3015 = vadd.f32 %v3011, %v39
  %v3016 = vadd.f32 %v3012, %v60
  %v3017 = vadd.f32 %v3013, %v40
  %v3018 = vadd.f32 %v3014, %v61
  %v3023 = vcombine.low %v3015, %v3016
  %v3024 = vcombine.low %v3017, %v3018
  %3027 = vst [vmem:[%s11] sm:$0xff] %v3023
  %3028 = vst [vmem:[%s11 + $0x8] sm:$0xff] %v3024
  // Predicated region
  $region46: #{residual_block.1} parent=0 // pred_check
    _
  $region47: #{residual_block.1} parent=0 // pred_check_branch
    %3030 = sbr.rel (0) target = $region49
  $region48: #{residual_block.1} parent=0 // pred_region
    _
  $region49: #{residual_block.1} parent=0 // pred_fallthru
    _
  // Predicated region
  $region50: #{residual_block.1} parent=0 // pred_check
    _
  $region51: #{residual_block.1} parent=0 // pred_check_branch
    %3032 = sbr.rel (0) target = $region53
  $region52: #{residual_block.1} parent=0 // pred_region
    _
  $region53: #{residual_block.1} parent=0 // pred_fallthru
    _

</llo_original>
